<compile_context>
chip_gen: v7x
topology: tpu7x:2x2x1
jax: 0.10.0
libtpu: 0.0.40
codegen_flags: <defaults>
</compile_context>

<pallas_src>
import functools

import numpy as np
import jax
import jax.numpy as jnp
from jax.experimental import pallas as pl
from jax.experimental.pallas import tpu as pltpu

ALPHA = 0.5
BETA = 0.5
MAP = {9: 3, 25: 5, 81: 9}   # reference's {9:3,25:5,91:9}: the 91 entry is never hit

_PARALLEL = pltpu.CompilerParams(dimension_semantics=("parallel",))


# ----------------------------------------------------------------------------- helpers (host-side)
def _interp_matrix(out_size, in_size):
    """Row-stochastic 1D bilinear interpolation matrix, PyTorch align_corners=False."""
    A = np.zeros((out_size, in_size), np.float32)
    scale = in_size / out_size
    for i in range(out_size):
        src = max((i + 0.5) * scale - 0.5, 0.0)
        i0 = min(int(np.floor(src)), in_size - 1)
        w = src - i0
        i1 = min(i0 + 1, in_size - 1)
        A[i, i0] += 1.0 - w
        A[i, i1] += w
    return A


# ----------------------------------------------------------------------------- correlation kernel
def _corr_kernel(feat_ref, refpad_ref, out_ref, *, H, W, C):
    # feat: (1, C, H, W), refpad: (1, C, H+2, W+2), out: (1, 9, H, W)  -- all channel-first
    feat = feat_ref[0]
    inv_c = 1.0 / C
    for d in range(9):
        dy, dx = d // 3, d % 3
        shifted = refpad_ref[0, :, dy:dy + H, dx:dx + W]          # (C, H, W)
        # reduce over the leading (non-lane) channel axis; one full (H, W) slab store per d
        out_ref[0, d] = jnp.sum(feat * shifted, axis=0) * inv_c


def correlation(feat, ref):
    """feat, ref: [B, C, H, W] NCHW -> corr [B, 9, H, W] (channel-first, like the torch op)."""
    B, C, H, W = feat.shape
    refpad = jnp.pad(ref, ((0, 0), (0, 0), (1, 1), (1, 1)))
    kernel = functools.partial(_corr_kernel, H=H, W=W, C=C)
    return pl.pallas_call(
        kernel,
        out_shape=jax.ShapeDtypeStruct((B, 9, H, W), jnp.float32),
        grid=(B,),
        in_specs=[pl.BlockSpec((1, C, H, W), lambda b: (b, 0, 0, 0)),
                  pl.BlockSpec((1, C, H + 2, W + 2), lambda b: (b, 0, 0, 0))],
        out_specs=pl.BlockSpec((1, 9, H, W), lambda b: (b, 0, 0, 0)),
        compiler_params=_PARALLEL,
    )(feat, refpad)


# ----------------------------------------------------------------------------- fused mix_corr kernel
def _mix_kernel(top_ref, botdi_ref, ah_ref, awt_ref, out_ref, *, c_top, wd_nz, bot_of_o, alpha):
    # top: (1, c_top, h, w), botdi: (1, c_bot, h2, w2), ah: (h2, h), awt: (w, w2),
    # out: (1, c2, h2, w2).  Spatial resize + displacement-space mix fused in one kernel,
    # so the upsampled corr volume never round-trips HBM.
    ups = []
    for c in range(c_top):
        tcw = jnp.dot(ah_ref[...], top_ref[0, c], preferred_element_type=jnp.float32)   # (h2, w)
        ups.append(jnp.dot(tcw, awt_ref[...], preferred_element_type=jnp.float32))      # (h2, w2)
    # Displacement-space bilinear expansion (beta folded into the sparse weights)
    # plus the alpha * corr_bot center-window scatter.  Each output channel is a full
    # (h2, w2) slab store.
    for o in range(len(wd_nz)):
        terms = [wgt * ups[c] for (c, wgt) in wd_nz[o]]
        q = bot_of_o.get(o)
        if q is not None:
            terms.append(alpha * botdi_ref[0, q])
        acc = terms[0]
        for term in terms[1:]:
            acc = acc + term
        out_ref[0, o] = acc


def mix_corr(corr_bot, corr_top, alpha=ALPHA, beta=BETA):
    """Exact reproduction of PyCorrAssemble.mix_corr (including the permute-less corr_bot.view)."""
    B, c_top, h, w = corr_top.shape
    _, c_bot, h2, w2 = corr_bot.shape
    d_bot, d_top = MAP[c_bot], MAP[c_top]
    d_top2 = 2 * d_top - 1
    c2 = d_top2 * d_top2

    ah = jnp.asarray(_interp_matrix(h2, h), jnp.float32)           # (h2, h)
    awt = jnp.asarray(_interp_matrix(w2, w).T, jnp.float32)        # (w, w2)

    # displacement-space interpolation weights (beta folded in), kept as a sparse
    # (<=4 non-zeros per output channel) structure -> pure VPU slab accumulation in-kernel.
    ad = _interp_matrix(d_top2, d_top)
    wd = beta * np.kron(ad, ad)                                    # (c2, c_top)
    wd_nz = tuple(tuple((c, float(wd[o, c])) for c in range(c_top) if wd[o, c] != 0.0)
                  for o in range(c2))

    i_bgn = (d_top2 - d_bot) // 2
    bot_of_o = {(i_bgn + a) * d_top2 + (i_bgn + b): a * d_bot + b
                for a in range(d_bot) for b in range(d_bot)}

    # exact reference semantics: corr_bot.view(nb, h2*w2, d_bot*d_bot) is a row-major
    # reinterpretation of the channel-first tensor (no permute).  De-interleave it once
    # (tiny tensor) so the kernel sees one spatial plane per bot displacement channel.
    botdi = jnp.transpose(corr_bot.reshape(B, h2 * w2, c_bot), (0, 2, 1)).reshape(B, c_bot, h2, w2)

    kernel = functools.partial(_mix_kernel, c_top=c_top, wd_nz=wd_nz,
                               bot_of_o=bot_of_o, alpha=alpha)
    return pl.pallas_call(
        kernel,
        out_shape=jax.ShapeDtypeStruct((B, c2, h2, w2), jnp.float32),
        grid=(B,),
        in_specs=[pl.BlockSpec((1, c_top, h, w), lambda b: (b, 0, 0, 0)),
                  pl.BlockSpec((1, c_bot, h2, w2), lambda b: (b, 0, 0, 0)),
                  pl.BlockSpec((h2, h), lambda b: (0, 0)),
                  pl.BlockSpec((w, w2), lambda b: (0, 0))],
        out_specs=pl.BlockSpec((1, c2, h2, w2), lambda b: (b, 0, 0, 0)),
        compiler_params=_PARALLEL,
    )(corr_top, botdi, ah, awt)


# ----------------------------------------------------------------------------- normalize + assemble kernel
def _assemble_kernel(aff_ref, featpad_ref, out_ref, *, H, W, k):
    # aff: (1, D2, H, W) channel-first, featpad: (1, C, H+2k, W+2k), out: (1, C, H, W)
    d = 2 * k + 1
    aff = aff_ref[0]                                       # (D2, H, W)
    denom = jnp.sum(aff, axis=0) + 1e-7                    # (H, W), outer-dim reduce
    # accumulate raw taps; per-tap weights broadcast along the *outer* channel axis (cheap)
    acc = aff[0][None] * featpad_ref[0, :, 0:H, 0:W]
    for idx in range(1, d * d):
        dy, dx = idx // d, idx % d
        acc = acc + aff[idx][None] * featpad_ref[0, :, dy:dy + H, dx:dx + W]
    # deferred normalization: one per-pixel reciprocal instead of normalizing D2 channels
    inv = 1.0 / denom
    out_ref[0] = acc * inv[None]


def assemble_norm(aff, feat, k):
    """aff: [B, (2k+1)^2, H, W], feat: [B, C, H, W] -> [B, C, H, W].
    Fuses the reference's aff / (sum(aff)+1e-7) normalization (deferred to one divide/pixel)."""
    B, D2, H, W = aff.shape
    C = feat.shape[1]
    featpad = jnp.pad(feat, ((0, 0), (0, 0), (k, k), (k, k)))
    kernel = functools.partial(_assemble_kernel, H=H, W=W, k=k)
    return pl.pallas_call(
        kernel,
        out_shape=jax.ShapeDtypeStruct((B, C, H, W), jnp.float32),
        grid=(B,),
        in_specs=[pl.BlockSpec((1, D2, H, W), lambda b: (b, 0, 0, 0)),
                  pl.BlockSpec((1, C, H + 2 * k, W + 2 * k), lambda b: (b, 0, 0, 0))],
        out_specs=pl.BlockSpec((1, C, H, W), lambda b: (b, 0, 0, 0)),
        compiler_params=_PARALLEL,
    )(aff, featpad)


# ----------------------------------------------------------------------------- ConcatUpdate kernel
def _concat_update_kernel(feat_ref, alig_ref, w1a_ref, w1b_ref, b1_ref,
                          w2_ref, b2_ref, w3_ref, b3_ref, w4_ref, b4_ref,
                          out_ref, *, H, W):
    # feat/alig: (1, C, HW) flattened NCHW; all matmuls are lane-dense with N = H*W.
    HW = H * W
    feat = feat_ref[0]                                     # (C, HW)
    alig = alig_ref[0]                                     # (C, HW)

    # 1x1 conv over the channel concat == two accumulated MXU matmuls (no concat copy).
    x = (jnp.dot(w1a_ref[...], feat, preferred_element_type=jnp.float32)
         + jnp.dot(w1b_ref[...], alig, preferred_element_type=jnp.float32)
         + b1_ref[...])                                    # (256, HW)

    col = jax.lax.broadcasted_iota(jnp.int32, (1, HW), 1) % W

    def conv3x3(xin, w_ref, b_ref):
        # 3x3 conv, padding 1.  Matmul each tap on the UNSHIFTED input (big N, small Cout),
        # then shift the small (Cout, HW) result along the flattened-pixel axis with zero
        # fill.  Row overflow is handled by the zero fill, column overflow by the col mask.
        cout = w_ref.shape[2]
        acc = None
        for ky in range(3):
            for kx in range(3):
                y = jnp.dot(w_ref[ky, kx], xin, preferred_element_type=jnp.float32)  # (Cout, HW)
                s = (ky - 1) * W + (kx - 1)
                if s > 0:      # result[p] = y[p + s]
                    y = jnp.concatenate(
                        [y[:, s:], jnp.zeros((cout, s), jnp.float32)], axis=1)
                elif s < 0:
                    y = jnp.concatenate(
                        [jnp.zeros((cout, -s), jnp.float32), y[:, :HW + s]], axis=1)
                if kx == 0:
                    y = jnp.where(col >= 1, y, 0.0)
                elif kx == 2:
                    y = jnp.where(col <= W - 2, y, 0.0)
                acc = y if acc is None else acc + y
        return acc + b_ref[...]

    x = conv3x3(x, w2_ref, b2_ref)                         # (16, HW)
    x = conv3x3(x, w3_ref, b3_ref)                         # (3,  HW)
    logits = conv3x3(x, w4_ref, b4_ref)                    # (2,  HW)

    m = jnp.max(logits, axis=0, keepdims=True)
    e = jnp.exp(logits - m)
    score = e / jnp.sum(e, axis=0, keepdims=True)          # (2, HW)
    out_ref[0] = score[0:1, :] * feat + score[1:2, :] * alig


def concat_update(feat, aligned, params):
    """feat, aligned: [B, C, H, W] NCHW -> [B, C, H, W] (ConcatUpdate forward)."""
    B, C, H, W = feat.shape
    HW = H * W
    w1a, w1b, b1, w2, b2, w3, b3, w4, b4 = params
    feat_f = feat.reshape(B, C, HW)        # pure row-major reshape, no data movement
    alig_f = aligned.reshape(B, C, HW)
    kernel = functools.partial(_concat_update_kernel, H=H, W=W)
    out = pl.pallas_call(
        kernel,
        out_shape=jax.ShapeDtypeStruct((B, C, HW), jnp.float32),
        grid=(B,),
        in_specs=[
            pl.BlockSpec((1, C, HW), lambda b: (b, 0, 0)),
            pl.BlockSpec((1, C, HW), lambda b: (b, 0, 0)),
            pl.BlockSpec(w1a.shape, lambda b: (0, 0)),
            pl.BlockSpec(w1b.shape, lambda b: (0, 0)),
            pl.BlockSpec(b1.shape, lambda b: (0, 0)),
            pl.BlockSpec(w2.shape, lambda b: (0, 0, 0, 0)),
            pl.BlockSpec(b2.shape, lambda b: (0, 0)),
            pl.BlockSpec(w3.shape, lambda b: (0, 0, 0, 0)),
            pl.BlockSpec(b3.shape, lambda b: (0, 0)),
            pl.BlockSpec(w4.shape, lambda b: (0, 0, 0, 0)),
            pl.BlockSpec(b4.shape, lambda b: (0, 0)),
        ],
        out_specs=pl.BlockSpec((1, C, HW), lambda b: (b, 0, 0)),
        compiler_params=_PARALLEL,
    )(feat_f, alig_f, w1a, w1b, b1, w2, b2, w3, b3, w4, b4)
    return out.reshape(B, C, H, W)


# ----------------------------------------------------------------------------- parameters
def init_concat_update_params(key, c_in):
    """ConcatUpdate: Conv(2*c_in->256, 1x1), Conv(256->16, 3x3), Conv(16->3, 3x3), Conv(3->2, 3x3).
    Weights ~ N(0, 0.01), biases 0, last-layer bias = [1, 0] (as in init_weights).
    Weights stored (Cout, Cin) / (kH, kW, Cout, Cin); biases stored (Cout, 1)."""
    ks = jax.random.split(key, 4)
    w1 = jax.random.normal(ks[0], (256, 2 * c_in), jnp.float32) * 0.01
    w1a, w1b = w1[:, :c_in], w1[:, c_in:]
    b1 = jnp.zeros((256, 1), jnp.float32)
    w2 = jax.random.normal(ks[1], (3, 3, 16, 256), jnp.float32) * 0.01
    b2 = jnp.zeros((16, 1), jnp.float32)
    w3 = jax.random.normal(ks[2], (3, 3, 3, 16), jnp.float32) * 0.01
    b3 = jnp.zeros((3, 1), jnp.float32)
    w4 = jax.random.normal(ks[3], (3, 3, 2, 3), jnp.float32) * 0.01
    b4 = jnp.asarray([[1.0], [0.0]], jnp.float32)
    return (w1a, w1b, b1, w2, b2, w3, b3, w4, b4)


# ----------------------------------------------------------------------------- full forward
def pycorr_assemble_forward(feats, feats_ref, params0, params1, params2):
    """feats / feats_ref: lists of 5 NCHW arrays (pyramid). Returns 5 NCHW arrays.
    Everything stays channel-first, so there are no layout round trips between stages."""
    aff2 = correlation(feats[2], feats_ref[2])   # [B, 9,  H2, W2]
    aff1 = correlation(feats[1], feats_ref[1])   # [B, 9,  H1, W1]
    aff0 = correlation(feats[0], feats_ref[0])   # [B, 9,  H0, W0]

    aff1 = mix_corr(aff1, aff2)                  # [B, 25, H1, W1]
    aff0 = mix_corr(aff0, aff1)                  # [B, 81, H0, W0]

    # use_softmax_norm=False branch (sum-normalization) fused into the assemble kernels
    feat0_upd = assemble_norm(aff0, feats_ref[0], k=4)
    feat1_upd = assemble_norm(aff1, feats_ref[1], k=2)
    feat2_upd = assemble_norm(aff2, feats[2], k=1)   # reference uses feat2, not feat2_ref

    out0 = concat_update(feats[0], feat0_upd, params0)
    out1 = concat_update(feats[1], feat1_upd, params1)
    out2 = concat_update(feats[2], feat2_upd, params2)
    return [out0, out1, out2, feats[3], feats[4]]


# ----------------------------------------------------------------------------- main
if __name__ == "__main__":
    key = jax.random.PRNGKey(0)
    B, C = 2, 32
    sizes = [32, 16, 8, 4, 2]   # scaled-down pyramid (real module uses 64/32/16/8/4, C=256)
    keys = jax.random.split(key, 16)
    feats = [jax.random.normal(keys[i], (B, C, s, s), jnp.float32) for i, s in enumerate(sizes)]
    feats_ref = [jax.random.normal(keys[5 + i], (B, C, s, s), jnp.float32) for i, s in enumerate(sizes)]
    params0 = init_concat_update_params(keys[10], C)
    params1 = init_concat_update_params(keys[11], C)
    params2 = init_concat_update_params(keys[12], C)

    # --- self-check 1: correlation kernel vs plain-JAX reference (level 2) ---
    H2 = sizes[2]
    corr_p = correlation(feats[2], feats_ref[2])
    fr_pad = jnp.pad(feats_ref[2], ((0, 0), (0, 0), (1, 1), (1, 1)))
    corr_ck = jnp.stack(
        [jnp.sum(feats[2] * fr_pad[:, :, dy:dy + H2, dx:dx + H2], axis=1) / C
         for dy in range(3) for dx in range(3)], axis=1)
    assert bool(jnp.allclose(corr_p, corr_ck, atol=1e-5))

    # --- self-check 2: fused mix_corr kernel vs plain-JAX reference (level 1) ---
    corr_top = corr_p                                     # (B, 9, 8, 8)
    corr_bot = correlation(feats[1], feats_ref[1])        # (B, 9, 16, 16)
    mix_p = mix_corr(corr_bot, corr_top)
    h, w = corr_top.shape[2:]
    h2, w2 = corr_bot.shape[2:]
    d_bot, d_top, d_top2 = 3, 3, 5
    ah_m = jnp.asarray(_interp_matrix(h2, h), jnp.float32)
    awt_m = jnp.asarray(_interp_matrix(w2, w).T, jnp.float32)
    up_ref = jnp.einsum('Hh,bchw,wW->bcHW', ah_m, corr_top, awt_m, precision='highest')
    wd_full = jnp.asarray(np.kron(_interp_matrix(d_top2, d_top), _interp_matrix(d_top2, d_top)),
                          jnp.float32)
    mix_ref = BETA * jnp.einsum('oc,bcHW->boHW', wd_full, up_ref, precision='highest')
    bot_pl = jnp.transpose(corr_bot.reshape(B, h2 * w2, 9), (0, 2, 1)).reshape(B, 9, h2, w2)
    i_bgn = (d_top2 - d_bot) // 2
    for a in range(d_bot):
        for b_ in range(d_bot):
            o = (i_bgn + a) * d_top2 + (i_bgn + b_)
            mix_ref = mix_ref.at[:, o].add(ALPHA * bot_pl[:, a * d_bot + b_])
    assert bool(jnp.allclose(mix_p, mix_ref, atol=2e-3, rtol=2e-3))

    # --- self-check 3: ConcatUpdate kernel vs XLA conv reference (level 2) ---
    upd_p = concat_update(feats[2], feats_ref[2], params2)
    w1a, w1b, b1, w2, b2, w3, b3, w4, b4 = params2
    xcat = jnp.concatenate([feats[2], feats_ref[2]], axis=1)
    w1_full = jnp.concatenate([w1a, w1b], axis=1)
    y = jnp.einsum('oc,bchw->bohw', w1_full, xcat, precision='highest') + b1.reshape(1, -1, 1, 1)

    def conv_ref(yin, wk, bk):
        wt = jnp.transpose(wk, (2, 3, 0, 1))              # (Cout, Cin, 3, 3) OIHW
        out = jax.lax.conv_general_dilated(
            yin, wt, (1, 1), ((1, 1), (1, 1)),
            dimension_numbers=('NCHW', 'OIHW', 'NCHW'),
            precision=jax.lax.Precision.HIGHEST)
        return out + bk.reshape(1, -1, 1, 1)

    y = conv_ref(y, w2, b2)
    y = conv_ref(y, w3, b3)
    logits_ref = conv_ref(y, w4, b4)
    score_ref = jax.nn.softmax(logits_ref, axis=1)
    upd_ref = score_ref[:, 0:1] * feats[2] + score_ref[:, 1:2] * feats_ref[2]
    assert bool(jnp.allclose(upd_p, upd_ref, atol=2e-3, rtol=2e-3))

    # --- full forward ---
    fwd = jax.jit(pycorr_assemble_forward)
    outs = jax.block_until_ready(fwd(feats, feats_ref, params0, params1, params2))

    assert outs[0].shape == (B, C, 32, 32)
    assert outs[1].shape == (B, C, 16, 16)
    assert outs[2].shape == (B, C, 8, 8)
    assert outs[3].shape == (B, C, 4, 4) and outs[4].shape == (B, C, 2, 2)
    assert all(bool(jnp.all(jnp.isfinite(o))) for o in outs[:3])

    print("KERNEL_OK")
</pallas_src>

<mosaic_0001>
module attributes {stable_mosaic.version = 11 : i64} {
  func.func @_corr_kernel(%arg0: i32, %arg1: memref<1x32x8x8xf32, #tpu.memory_space<vmem>>, %arg2: memref<1x32x10x10xf32, #tpu.memory_space<vmem>>, %arg3: memref<1x9x8x8xf32, #tpu.memory_space<vmem>>) attributes {dimension_semantics = [#tpu.dimension_semantics<parallel>], iteration_bounds = array<i64: 2>, scalar_prefetch = 0 : i64, scratch_operands = 0 : i64, tpu.core_type = #tpu.core_type<tc>, window_params = [{transform_indices = @transform_0, window_bounds = array<i64: 1, 32, 8, 8>}, {transform_indices = @transform_1, window_bounds = array<i64: 1, 32, 10, 10>}, {transform_indices = @transform_2, window_bounds = array<i64: 1, 9, 8, 8>}]} {
    %c0 = arith.constant 0 : index
    %c0_0 = arith.constant 0 : index
    %c0_1 = arith.constant 0 : index
    %c0_2 = arith.constant 0 : index
    %0 = vector.load %arg1[%c0, %c0_0, %c0_1, %c0_2] : memref<1x32x8x8xf32, #tpu.memory_space<vmem>>, vector<1x32x8x8xf32>
    %1 = vector.shape_cast %0 : vector<1x32x8x8xf32> to vector<32x8x8xf32>
    %c0_3 = arith.constant 0 : index
    %c0_4 = arith.constant 0 : index
    %c0_5 = arith.constant 0 : index
    %c0_6 = arith.constant 0 : index
    %2 = vector.load %arg2[%c0_3, %c0_4, %c0_5, %c0_6] : memref<1x32x10x10xf32, #tpu.memory_space<vmem>>, vector<1x32x8x8xf32>
    %3 = vector.shape_cast %2 : vector<1x32x8x8xf32> to vector<32x8x8xf32>
    %4 = arith.mulf %1, %3 : vector<32x8x8xf32>
    %cst = arith.constant dense<0.000000e+00> : vector<8x8xf32>
    %5 = vector.multi_reduction <add>, %4, %cst [0] : vector<32x8x8xf32> to vector<8x8xf32>
    %cst_7 = arith.constant 3.125000e-02 : f32
    %6 = vector.broadcast %cst_7 : f32 to vector<8x8xf32>
    %7 = arith.mulf %5, %6 : vector<8x8xf32>
    %c0_8 = arith.constant 0 : index
    %c0_9 = arith.constant 0 : index
    %c0_10 = arith.constant 0 : index
    %c0_11 = arith.constant 0 : index
    %8 = vector.load %arg3[%c0_8, %c0_9, %c0_10, %c0_11] : memref<1x9x8x8xf32, #tpu.memory_space<vmem>>, vector<1x1x8x8xf32>
    %9 = vector.shape_cast %8 : vector<1x1x8x8xf32> to vector<8x8xf32>
    %10 = vector.shape_cast %7 : vector<8x8xf32> to vector<1x1x8x8xf32>
    tpu.vector_store %arg3[%c0_8, %c0_9, %c0_10, %c0_11], %10 {strides = array<i32>} : memref<1x9x8x8xf32, #tpu.memory_space<vmem>>, vector<1x1x8x8xf32>,
    %c0_12 = arith.constant 0 : index
    %c0_13 = arith.constant 0 : index
    %c0_14 = arith.constant 0 : index
    %c1 = arith.constant 1 : index
    %11 = vector.load %arg2[%c0_12, %c0_13, %c0_14, %c1] : memref<1x32x10x10xf32, #tpu.memory_space<vmem>>, vector<1x32x8x8xf32>
    %12 = vector.shape_cast %11 : vector<1x32x8x8xf32> to vector<32x8x8xf32>
    %13 = arith.mulf %1, %12 : vector<32x8x8xf32>
    %cst_15 = arith.constant dense<0.000000e+00> : vector<8x8xf32>
    %14 = vector.multi_reduction <add>, %13, %cst_15 [0] : vector<32x8x8xf32> to vector<8x8xf32>
    %cst_16 = arith.constant 3.125000e-02 : f32
    %15 = vector.broadcast %cst_16 : f32 to vector<8x8xf32>
    %16 = arith.mulf %14, %15 : vector<8x8xf32>
    %c0_17 = arith.constant 0 : index
    %c1_18 = arith.constant 1 : index
    %c0_19 = arith.constant 0 : index
    %c0_20 = arith.constant 0 : index
    %17 = vector.load %arg3[%c0_17, %c1_18, %c0_19, %c0_20] : memref<1x9x8x8xf32, #tpu.memory_space<vmem>>, vector<1x1x8x8xf32>
    %18 = vector.shape_cast %17 : vector<1x1x8x8xf32> to vector<8x8xf32>
    %19 = vector.shape_cast %16 : vector<8x8xf32> to vector<1x1x8x8xf32>
    tpu.vector_store %arg3[%c0_17, %c1_18, %c0_19, %c0_20], %19 {strides = array<i32>} : memref<1x9x8x8xf32, #tpu.memory_space<vmem>>, vector<1x1x8x8xf32>,
    %c0_21 = arith.constant 0 : index
    %c0_22 = arith.constant 0 : index
    %c0_23 = arith.constant 0 : index
    %c2 = arith.constant 2 : index
    %20 = vector.load %arg2[%c0_21, %c0_22, %c0_23, %c2] : memref<1x32x10x10xf32, #tpu.memory_space<vmem>>, vector<1x32x8x8xf32>
    %21 = vector.shape_cast %20 : vector<1x32x8x8xf32> to vector<32x8x8xf32>
    %22 = arith.mulf %1, %21 : vector<32x8x8xf32>
    %cst_24 = arith.constant dense<0.000000e+00> : vector<8x8xf32>
    %23 = vector.multi_reduction <add>, %22, %cst_24 [0] : vector<32x8x8xf32> to vector<8x8xf32>
    %cst_25 = arith.constant 3.125000e-02 : f32
    %24 = vector.broadcast %cst_25 : f32 to vector<8x8xf32>
    %25 = arith.mulf %23, %24 : vector<8x8xf32>
    %c0_26 = arith.constant 0 : index
    %c2_27 = arith.constant 2 : index
    %c0_28 = arith.constant 0 : index
    %c0_29 = arith.constant 0 : index
    %26 = vector.load %arg3[%c0_26, %c2_27, %c0_28, %c0_29] : memref<1x9x8x8xf32, #tpu.memory_space<vmem>>, vector<1x1x8x8xf32>
    %27 = vector.shape_cast %26 : vector<1x1x8x8xf32> to vector<8x8xf32>
    %28 = vector.shape_cast %25 : vector<8x8xf32> to vector<1x1x8x8xf32>
    tpu.vector_store %arg3[%c0_26, %c2_27, %c0_28, %c0_29], %28 {strides = array<i32>} : memref<1x9x8x8xf32, #tpu.memory_space<vmem>>, vector<1x1x8x8xf32>,
    %c0_30 = arith.constant 0 : index
    %c0_31 = arith.constant 0 : index
    %c1_32 = arith.constant 1 : index
    %c0_33 = arith.constant 0 : index
    %29 = vector.load %arg2[%c0_30, %c0_31, %c1_32, %c0_33] : memref<1x32x10x10xf32, #tpu.memory_space<vmem>>, vector<1x32x8x8xf32>
    %30 = vector.shape_cast %29 : vector<1x32x8x8xf32> to vector<32x8x8xf32>
    %31 = arith.mulf %1, %30 : vector<32x8x8xf32>
    %cst_34 = arith.constant dense<0.000000e+00> : vector<8x8xf32>
    %32 = vector.multi_reduction <add>, %31, %cst_34 [0] : vector<32x8x8xf32> to vector<8x8xf32>
    %cst_35 = arith.constant 3.125000e-02 : f32
    %33 = vector.broadcast %cst_35 : f32 to vector<8x8xf32>
    %34 = arith.mulf %32, %33 : vector<8x8xf32>
    %c0_36 = arith.constant 0 : index
    %c3 = arith.constant 3 : index
    %c0_37 = arith.constant 0 : index
    %c0_38 = arith.constant 0 : index
    %35 = vector.load %arg3[%c0_36, %c3, %c0_37, %c0_38] : memref<1x9x8x8xf32, #tpu.memory_space<vmem>>, vector<1x1x8x8xf32>
    %36 = vector.shape_cast %35 : vector<1x1x8x8xf32> to vector<8x8xf32>
    %37 = vector.shape_cast %34 : vector<8x8xf32> to vector<1x1x8x8xf32>
    tpu.vector_store %arg3[%c0_36, %c3, %c0_37, %c0_38], %37 {strides = array<i32>} : memref<1x9x8x8xf32, #tpu.memory_space<vmem>>, vector<1x1x8x8xf32>,
    %c0_39 = arith.constant 0 : index
    %c0_40 = arith.constant 0 : index
    %c1_41 = arith.constant 1 : index
    %c1_42 = arith.constant 1 : index
    %38 = vector.load %arg2[%c0_39, %c0_40, %c1_41, %c1_42] : memref<1x32x10x10xf32, #tpu.memory_space<vmem>>, vector<1x32x8x8xf32>
    %39 = vector.shape_cast %38 : vector<1x32x8x8xf32> to vector<32x8x8xf32>
    %40 = arith.mulf %1, %39 : vector<32x8x8xf32>
    %cst_43 = arith.constant dense<0.000000e+00> : vector<8x8xf32>
    %41 = vector.multi_reduction <add>, %40, %cst_43 [0] : vector<32x8x8xf32> to vector<8x8xf32>
    %cst_44 = arith.constant 3.125000e-02 : f32
    %42 = vector.broadcast %cst_44 : f32 to vector<8x8xf32>
    %43 = arith.mulf %41, %42 : vector<8x8xf32>
    %c0_45 = arith.constant 0 : index
    %c4 = arith.constant 4 : index
    %c0_46 = arith.constant 0 : index
    %c0_47 = arith.constant 0 : index
    %44 = vector.load %arg3[%c0_45, %c4, %c0_46, %c0_47] : memref<1x9x8x8xf32, #tpu.memory_space<vmem>>, vector<1x1x8x8xf32>
    %45 = vector.shape_cast %44 : vector<1x1x8x8xf32> to vector<8x8xf32>
    %46 = vector.shape_cast %43 : vector<8x8xf32> to vector<1x1x8x8xf32>
    tpu.vector_store %arg3[%c0_45, %c4, %c0_46, %c0_47], %46 {strides = array<i32>} : memref<1x9x8x8xf32, #tpu.memory_space<vmem>>, vector<1x1x8x8xf32>,
    %c0_48 = arith.constant 0 : index
    %c0_49 = arith.constant 0 : index
    %c1_50 = arith.constant 1 : index
    %c2_51 = arith.constant 2 : index
    %47 = vector.load %arg2[%c0_48, %c0_49, %c1_50, %c2_51] : memref<1x32x10x10xf32, #tpu.memory_space<vmem>>, vector<1x32x8x8xf32>
    %48 = vector.shape_cast %47 : vector<1x32x8x8xf32> to vector<32x8x8xf32>
    %49 = arith.mulf %1, %48 : vector<32x8x8xf32>
    %cst_52 = arith.constant dense<0.000000e+00> : vector<8x8xf32>
    %50 = vector.multi_reduction <add>, %49, %cst_52 [0] : vector<32x8x8xf32> to vector<8x8xf32>
    %cst_53 = arith.constant 3.125000e-02 : f32
    %51 = vector.broadcast %cst_53 : f32 to vector<8x8xf32>
    %52 = arith.mulf %50, %51 : vector<8x8xf32>
    %c0_54 = arith.constant 0 : index
    %c5 = arith.constant 5 : index
    %c0_55 = arith.constant 0 : index
    %c0_56 = arith.constant 0 : index
    %53 = vector.load %arg3[%c0_54, %c5, %c0_55, %c0_56] : memref<1x9x8x8xf32, #tpu.memory_space<vmem>>, vector<1x1x8x8xf32>
    %54 = vector.shape_cast %53 : vector<1x1x8x8xf32> to vector<8x8xf32>
    %55 = vector.shape_cast %52 : vector<8x8xf32> to vector<1x1x8x8xf32>
    tpu.vector_store %arg3[%c0_54, %c5, %c0_55, %c0_56], %55 {strides = array<i32>} : memref<1x9x8x8xf32, #tpu.memory_space<vmem>>, vector<1x1x8x8xf32>,
    %c0_57 = arith.constant 0 : index
    %c0_58 = arith.constant 0 : index
    %c2_59 = arith.constant 2 : index
    %c0_60 = arith.constant 0 : index
    %56 = vector.load %arg2[%c0_57, %c0_58, %c2_59, %c0_60] : memref<1x32x10x10xf32, #tpu.memory_space<vmem>>, vector<1x32x8x8xf32>
    %57 = vector.shape_cast %56 : vector<1x32x8x8xf32> to vector<32x8x8xf32>
    %58 = arith.mulf %1, %57 : vector<32x8x8xf32>
    %cst_61 = arith.constant dense<0.000000e+00> : vector<8x8xf32>
    %59 = vector.multi_reduction <add>, %58, %cst_61 [0] : vector<32x8x8xf32> to vector<8x8xf32>
    %cst_62 = arith.constant 3.125000e-02 : f32
    %60 = vector.broadcast %cst_62 : f32 to vector<8x8xf32>
    %61 = arith.mulf %59, %60 : vector<8x8xf32>
    %c0_63 = arith.constant 0 : index
    %c6 = arith.constant 6 : index
    %c0_64 = arith.constant 0 : index
    %c0_65 = arith.constant 0 : index
    %62 = vector.load %arg3[%c0_63, %c6, %c0_64, %c0_65] : memref<1x9x8x8xf32, #tpu.memory_space<vmem>>, vector<1x1x8x8xf32>
    %63 = vector.shape_cast %62 : vector<1x1x8x8xf32> to vector<8x8xf32>
    %64 = vector.shape_cast %61 : vector<8x8xf32> to vector<1x1x8x8xf32>
    tpu.vector_store %arg3[%c0_63, %c6, %c0_64, %c0_65], %64 {strides = array<i32>} : memref<1x9x8x8xf32, #tpu.memory_space<vmem>>, vector<1x1x8x8xf32>,
    %c0_66 = arith.constant 0 : index
    %c0_67 = arith.constant 0 : index
    %c2_68 = arith.constant 2 : index
    %c1_69 = arith.constant 1 : index
    %65 = vector.load %arg2[%c0_66, %c0_67, %c2_68, %c1_69] : memref<1x32x10x10xf32, #tpu.memory_space<vmem>>, vector<1x32x8x8xf32>
    %66 = vector.shape_cast %65 : vector<1x32x8x8xf32> to vector<32x8x8xf32>
    %67 = arith.mulf %1, %66 : vector<32x8x8xf32>
    %cst_70 = arith.constant dense<0.000000e+00> : vector<8x8xf32>
    %68 = vector.multi_reduction <add>, %67, %cst_70 [0] : vector<32x8x8xf32> to vector<8x8xf32>
    %cst_71 = arith.constant 3.125000e-02 : f32
    %69 = vector.broadcast %cst_71 : f32 to vector<8x8xf32>
    %70 = arith.mulf %68, %69 : vector<8x8xf32>
    %c0_72 = arith.constant 0 : index
    %c7 = arith.constant 7 : index
    %c0_73 = arith.constant 0 : index
    %c0_74 = arith.constant 0 : index
    %71 = vector.load %arg3[%c0_72, %c7, %c0_73, %c0_74] : memref<1x9x8x8xf32, #tpu.memory_space<vmem>>, vector<1x1x8x8xf32>
    %72 = vector.shape_cast %71 : vector<1x1x8x8xf32> to vector<8x8xf32>
    %73 = vector.shape_cast %70 : vector<8x8xf32> to vector<1x1x8x8xf32>
    tpu.vector_store %arg3[%c0_72, %c7, %c0_73, %c0_74], %73 {strides = array<i32>} : memref<1x9x8x8xf32, #tpu.memory_space<vmem>>, vector<1x1x8x8xf32>,
    %c0_75 = arith.constant 0 : index
    %c0_76 = arith.constant 0 : index
    %c2_77 = arith.constant 2 : index
    %c2_78 = arith.constant 2 : index
    %74 = vector.load %arg2[%c0_75, %c0_76, %c2_77, %c2_78] : memref<1x32x10x10xf32, #tpu.memory_space<vmem>>, vector<1x32x8x8xf32>
    %75 = vector.shape_cast %74 : vector<1x32x8x8xf32> to vector<32x8x8xf32>
    %76 = arith.mulf %1, %75 : vector<32x8x8xf32>
    %cst_79 = arith.constant dense<0.000000e+00> : vector<8x8xf32>
    %77 = vector.multi_reduction <add>, %76, %cst_79 [0] : vector<32x8x8xf32> to vector<8x8xf32>
    %cst_80 = arith.constant 3.125000e-02 : f32
    %78 = vector.broadcast %cst_80 : f32 to vector<8x8xf32>
    %79 = arith.mulf %77, %78 : vector<8x8xf32>
    %c0_81 = arith.constant 0 : index
    %c8 = arith.constant 8 : index
    %c0_82 = arith.constant 0 : index
    %c0_83 = arith.constant 0 : index
    %80 = vector.load %arg3[%c0_81, %c8, %c0_82, %c0_83] : memref<1x9x8x8xf32, #tpu.memory_space<vmem>>, vector<1x1x8x8xf32>
    %81 = vector.shape_cast %80 : vector<1x1x8x8xf32> to vector<8x8xf32>
    %82 = vector.shape_cast %79 : vector<8x8xf32> to vector<1x1x8x8xf32>
    tpu.vector_store %arg3[%c0_81, %c8, %c0_82, %c0_83], %82 {strides = array<i32>} : memref<1x9x8x8xf32, #tpu.memory_space<vmem>>, vector<1x1x8x8xf32>,
    return
  }
  func.func @transform_0(%arg0: i32) -> (i32, i32, i32, i32) {
    %c0_i32 = arith.constant 0 : i32
    %c0_i32_0 = arith.constant 0 : i32
    %c0_i32_1 = arith.constant 0 : i32
    %c0_i32_2 = arith.constant 0 : i32
    return %arg0, %c0_i32, %c0_i32_0, %c0_i32_1 : i32, i32, i32, i32
  }
  func.func @transform_1(%arg0: i32) -> (i32, i32, i32, i32) {
    %c0_i32 = arith.constant 0 : i32
    %c0_i32_0 = arith.constant 0 : i32
    %c0_i32_1 = arith.constant 0 : i32
    %c0_i32_2 = arith.constant 0 : i32
    return %arg0, %c0_i32, %c0_i32_0, %c0_i32_1 : i32, i32, i32, i32
  }
  func.func @transform_2(%arg0: i32) -> (i32, i32, i32, i32) {
    %c0_i32 = arith.constant 0 : i32
    %c0_i32_0 = arith.constant 0 : i32
    %c0_i32_1 = arith.constant 0 : i32
    %c0_i32_2 = arith.constant 0 : i32
    return %arg0, %c0_i32, %c0_i32_0, %c0_i32_1 : i32, i32, i32, i32
  }
}

</mosaic_0001>

<llo_original>
// kernel: tpu_custom_call.1
$region0: #{tpu_custom_call.1}
  #allocation0 [shape = 'u32[]', space=smem, size = 0x4, offset = 0x4, fixed_abs, tag = 'smem constant byte address 0x4 - core index']
  #allocation1 [shape = 'u32[144,128]{1,0:T(1,128)}', space=vmem, size = 0x12000, scoped, tag = 'internal scratch']
  %s0 = inlined_call_operand.vmem [shape: f32[2,32,8,8], index: 0, kind: input, shape index: {}]
  %s1 = inlined_call_operand.vmem [shape: f32[2,32,10,10], index: 1, kind: input, shape index: {}]
  %s2 = inlined_call_operand.vmem [shape: f32[2,9,8,8], index: 2, kind: output, shape index: {}]
  %s3 = sld [smem:[#allocation0]]
  $region41: #{tpu_custom_call.1} parent=0
    _
  %s5 = ssub.s32 1, %s3
  %s6 = scalar_select 0, %s5, %s3
  loop: start=0, step=1, limit=4
  $region2: #{tpu_custom_call.1} parent=0 // loop_pre_header
    _
  $region3: #{tpu_custom_call.1} parent=0 // loop_header
    %s8 = sphi 0, %s12
    %p9 = scmp.ge.s32.totalorder %s8, 4
    %s18 = sphi 0, %s20
    %s21 = sphi 0, %s18
    %s22 = sphi 0, %s21
    %s38 = sphi 0, %s22
    %s44 = sphi 0, %s46
    %s47 = sphi 0, %s44
    %s48 = sphi 0, %s47
    %s64 = sphi 0, %s48
    %s70 = sphi 0, %s72
    %s73 = sphi 0, %s70
    %s74 = sphi 0, %s73
    %s90 = sphi 0, %s74
  $region4: #{tpu_custom_call.1} parent=0 // loop_header_branch
    %11 = sbr.rel (%p9) target = $region8
  $region5: #{tpu_custom_call.1} parent=0 // loop_body
    %s13 = ssub.s32 %s8, 1
    %s14 = ssub.s32 %s8, 2
    %s15 = sadd.s32 %s8, 1
    %s16 = ssub.s32 %s8, %s15
    %p17 = scmp.eq.s32.totalorder %s16, 0
    %s19 = sadd.s32 %s18, 1
    %s20 = scalar_select %p17, %s18, %s19
    %p23 = pneg %p17
    %p24 = scmp.eq.s32.totalorder %s8, 1
    %p25 = por %p23, %p24
    %p26 = scmp.ne.s32.totalorder %s18, %s21
    %p27 = scmp.eq.s32.totalorder %s8, 0
    %p28 = por %p26, %p27
    %p29 = scmp.ne.s32.totalorder %s18, %s21
    %p30 = scmp.eq.s32.totalorder %s13, 1
    %p31 = por %p29, %p30
    %p32 = scmp.ne.s32.totalorder %s21, %s22
    %p33 = scmp.eq.s32.totalorder %s13, 0
    %p34 = por %p32, %p33
    %p35 = scmp.ne.s32.totalorder %s21, %s22
    %p36 = scmp.eq.s32.totalorder %s14, 1
    %p37 = por %p35, %p36
    %p39 = scmp.ne.s32.totalorder %s22, %s38
    %p40 = scmp.eq.s32.totalorder %s14, 0
    %p41 = por %p39, %p40
    %s42 = ssub.s32 %s8, %s15
    %p43 = scmp.eq.s32.totalorder %s42, 0
    %s45 = sadd.s32 %s44, 1
    %s46 = scalar_select %p43, %s44, %s45
    %p49 = pneg %p43
    %p50 = scmp.eq.s32.totalorder %s8, 1
    %p51 = por %p49, %p50
    %p52 = scmp.ne.s32.totalorder %s44, %s47
    %p53 = scmp.eq.s32.totalorder %s8, 0
    %p54 = por %p52, %p53
    %p55 = scmp.ne.s32.totalorder %s44, %s47
    %p56 = scmp.eq.s32.totalorder %s13, 1
    %p57 = por %p55, %p56
    %p58 = scmp.ne.s32.totalorder %s47, %s48
    %p59 = scmp.eq.s32.totalorder %s13, 0
    %p60 = por %p58, %p59
    %p61 = scmp.ne.s32.totalorder %s47, %s48
    %p62 = scmp.eq.s32.totalorder %s14, 1
    %p63 = por %p61, %p62
    %p65 = scmp.ne.s32.totalorder %s48, %s64
    %p66 = scmp.eq.s32.totalorder %s14, 0
    %p67 = por %p65, %p66
    %s68 = ssub.s32 %s8, %s15
    %p69 = scmp.eq.s32.totalorder %s68, 0
    %s71 = sadd.s32 %s70, 1
    %s72 = scalar_select %p69, %s70, %s71
    %p75 = pneg %p69
    %p76 = scmp.eq.s32.totalorder %s8, 1
    %p77 = por %p75, %p76
    %p78 = scmp.ne.s32.totalorder %s70, %s73
    %p79 = scmp.eq.s32.totalorder %s8, 0
    %p80 = por %p78, %p79
    %p81 = scmp.ne.s32.totalorder %s70, %s73
    %p82 = scmp.eq.s32.totalorder %s13, 1
    %p83 = por %p81, %p82
    %p84 = scmp.ne.s32.totalorder %s73, %s74
    %p85 = scmp.eq.s32.totalorder %s13, 0
    %p86 = por %p84, %p85
    %p87 = scmp.ne.s32.totalorder %s73, %s74
    %p88 = scmp.eq.s32.totalorder %s14, 1
    %p89 = por %p87, %p88
    %p91 = scmp.ne.s32.totalorder %s74, %s90
    %p92 = scmp.eq.s32.totalorder %s14, 0
    %p93 = por %p91, %p92
    %p94 = scmp.le.s32.totalorder 1, %s8
    %p95 = scmp.lt.s32.totalorder %s8, 3
    %p96 = pnand %p94, %p95
    %p97 = pneg %p96
    // Predicated region
    $region9: #{tpu_custom_call.1} parent=5 // pred_check
      _
    $region10: #{tpu_custom_call.1} parent=5 // pred_check_branch
      %99 = sbr.rel (%p96) target = $region12
    $region11: #{tpu_custom_call.1} parent=5 // pred_region
      %s100 = ssub.s32 %s8, 1
    $region12: #{tpu_custom_call.1} parent=5 // pred_fallthru
      _
    %p101 = scmp.lt.s32.totalorder %s8, 2
    // Predicated region
    $region13: #{tpu_custom_call.1} parent=5 // pred_check
      %p102 = pneg %p101
    $region14: #{tpu_custom_call.1} parent=5 // pred_check_branch
      %104 = sbr.rel (%p102) target = $region16
    $region15: #{tpu_custom_call.1} parent=5 // pred_region
      // Predicated region
      $region17: #{tpu_custom_call.1} parent=15 // pred_check
        %p105 = pneg %p28
      $region18: #{tpu_custom_call.1} parent=15 // pred_check_branch
        %107 = sbr.rel (%p105) target = $region20
      $region19: #{tpu_custom_call.1} parent=15 // pred_region
        %p108 = scmp.lt.s32.totalorder %s8, 1
        %s109 = scalar_select %p108, %s8, 1
        %s110 = smul.addr %s109, 32
        %s111 = smul.addr %s110, 8
        %s112 = scalar_lea.vmem %s0, %s111
      $region20: #{tpu_custom_call.1} parent=15 // pred_fallthru
        _
      // Predicated region
      $region21: #{tpu_custom_call.1} parent=15 // pred_check
        %p113 = pneg %p54
      $region22: #{tpu_custom_call.1} parent=15 // pred_check_branch
        %115 = sbr.rel (%p113) target = $region24
      $region23: #{tpu_custom_call.1} parent=15 // pred_region
        %p116 = scmp.lt.s32.totalorder %s8, 1
        %s117 = scalar_select %p116, %s8, 1
        %s118 = smul.addr %s117, 64
        %s119 = smul.addr %s118, 8
        %s120 = scalar_lea.vmem %s1, %s119
      $region24: #{tpu_custom_call.1} parent=15 // pred_fallthru
        _
    $region16: #{tpu_custom_call.1} parent=5 // pred_fallthru
      _
    %p121 = scmp.le.s32.totalorder 1, %s8
    %p122 = scmp.lt.s32.totalorder %s8, 3
    %p123 = pnand %p121, %p122
    %p124 = pneg %p123
    // Predicated region
    $region25: #{tpu_custom_call.1} parent=5 // pred_check
      _
    $region26: #{tpu_custom_call.1} parent=5 // pred_check_branch
      %126 = sbr.rel (%p123) target = $region28
    $region27: #{tpu_custom_call.1} parent=5 // pred_region
      %s127 = ssub.s32 %s8, 1
      %p128 = scmp.lt.s32.totalorder %s13, 1
      %s129 = scalar_select %p128, %s13, 1
      %s130 = smul.addr %s129, 32
      %s131 = smul.addr %s130, 8
      %s132 = scalar_lea.vmem %s0, %s131
      %p133 = pneg %p34
      %p134 = pneg %p31
      %p135 = scmp.lt.s32.totalorder %s13, 1
      %s136 = scalar_select %p135, %s13, 1
      %s137 = smul.addr %s136, 64
      %s138 = smul.addr %s137, 8
      %s139 = scalar_lea.vmem %s1, %s138
      %p140 = pneg %p60
      %p141 = pneg %p57
      %p142 = pneg %p86
      %p143 = pneg %p83
      %p144 = scmp.lt.s32.totalorder %s13, 1
      %s145 = scalar_select %p144, %s13, 1
      %s146 = smul.addr %s145, 9
      %s147 = smul.addr %s146, 8
      %s148 = scalar_lea.vmem %s2, %s147
      %p149 = scmp.lt.s32.totalorder %s13, 1
      %s150 = scalar_select %p149, %s13, 1
      %s151 = smul.addr %s150, 32
      %s152 = smul.addr %s151, 8
      %s153 = scalar_lea.vmem %s0, %s152
      %p154 = scmp.lt.s32.totalorder %s13, 1
      %s155 = scalar_select %p154, %s13, 1
      %s156 = smul.addr %s155, 64
      %s157 = smul.addr %s156, 8
      %s158 = scalar_lea.vmem %s1, %s157
      %p159 = scmp.lt.s32.totalorder %s13, 1
      %s160 = scalar_select %p159, %s13, 1
      %s161 = smul.addr %s160, 9
      %s162 = smul.addr %s161, 8
      %s163 = scalar_lea.vmem %s2, %s162
      %v164 = vld [vmem:[%s153] sm:$0xff]
      %v165 = vld [vmem:[%s153 + $0x8] sm:$0xff]
      %v166 = vld [vmem:[%s153 + $0x10] sm:$0xff]
      %v167 = vld [vmem:[%s153 + $0x18] sm:$0xff]
      %v168 = vld [vmem:[%s153 + $0x20] sm:$0xff]
      %v169 = vld [vmem:[%s153 + $0x28] sm:$0xff]
      %v170 = vld [vmem:[%s153 + $0x30] sm:$0xff]
      %v171 = vld [vmem:[%s153 + $0x38] sm:$0xff]
      %v172 = vld [vmem:[%s153 + $0x40] sm:$0xff]
      %v173 = vld [vmem:[%s153 + $0x48] sm:$0xff]
      %v174 = vld [vmem:[%s153 + $0x50] sm:$0xff]
      %v175 = vld [vmem:[%s153 + $0x58] sm:$0xff]
      %v176 = vld [vmem:[%s153 + $0x60] sm:$0xff]
      %v177 = vld [vmem:[%s153 + $0x68] sm:$0xff]
      %v178 = vld [vmem:[%s153 + $0x70] sm:$0xff]
      %v179 = vld [vmem:[%s153 + $0x78] sm:$0xff]
      %v180 = vld [vmem:[%s153 + $0x80] sm:$0xff]
      %v181 = vld [vmem:[%s153 + $0x88] sm:$0xff]
      %v182 = vld [vmem:[%s153 + $0x90] sm:$0xff]
      %v183 = vld [vmem:[%s153 + $0x98] sm:$0xff]
      %v184 = vld [vmem:[%s153 + $0xa0] sm:$0xff]
      %v185 = vld [vmem:[%s153 + $0xa8] sm:$0xff]
      %v186 = vld [vmem:[%s153 + $0xb0] sm:$0xff]
      %v187 = vld [vmem:[%s153 + $0xb8] sm:$0xff]
      %v188 = vld [vmem:[%s153 + $0xc0] sm:$0xff]
      %v189 = vld [vmem:[%s153 + $0xc8] sm:$0xff]
      %v190 = vld [vmem:[%s153 + $0xd0] sm:$0xff]
      %v191 = vld [vmem:[%s153 + $0xd8] sm:$0xff]
      %v192 = vld [vmem:[%s153 + $0xe0] sm:$0xff]
      %v193 = vld [vmem:[%s153 + $0xe8] sm:$0xff]
      %v194 = vld [vmem:[%s153 + $0xf0] sm:$0xff]
      %v195 = vld [vmem:[%s153 + $0xf8] sm:$0xff]
      %v196 = vld [vmem:[%s158] sm:$0xff]
      %v197 = vld [vmem:[%s158 + $0x10] sm:$0xff]
      %v198 = vld [vmem:[%s158 + $0x20] sm:$0xff]
      %v199 = vld [vmem:[%s158 + $0x30] sm:$0xff]
      %v200 = vld [vmem:[%s158 + $0x40] sm:$0xff]
      %v201 = vld [vmem:[%s158 + $0x50] sm:$0xff]
      %v202 = vld [vmem:[%s158 + $0x60] sm:$0xff]
      %v203 = vld [vmem:[%s158 + $0x70] sm:$0xff]
      %v204 = vld [vmem:[%s158 + $0x80] sm:$0xff]
      %v205 = vld [vmem:[%s158 + $0x90] sm:$0xff]
      %v206 = vld [vmem:[%s158 + $0xa0] sm:$0xff]
      %v207 = vld [vmem:[%s158 + $0xb0] sm:$0xff]
      %v208 = vld [vmem:[%s158 + $0xc0] sm:$0xff]
      %v209 = vld [vmem:[%s158 + $0xd0] sm:$0xff]
      %v210 = vld [vmem:[%s158 + $0xe0] sm:$0xff]
      %v211 = vld [vmem:[%s158 + $0xf0] sm:$0xff]
      %v212 = vld [vmem:[%s158 + $0x100] sm:$0xff]
      %v213 = vld [vmem:[%s158 + $0x110] sm:$0xff]
      %v214 = vld [vmem:[%s158 + $0x120] sm:$0xff]
      %v215 = vld [vmem:[%s158 + $0x130] sm:$0xff]
      %v216 = vld [vmem:[%s158 + $0x140] sm:$0xff]
      %v217 = vld [vmem:[%s158 + $0x150] sm:$0xff]
      %v218 = vld [vmem:[%s158 + $0x160] sm:$0xff]
      %v219 = vld [vmem:[%s158 + $0x170] sm:$0xff]
      %v220 = vld [vmem:[%s158 + $0x180] sm:$0xff]
      %v221 = vld [vmem:[%s158 + $0x190] sm:$0xff]
      %v222 = vld [vmem:[%s158 + $0x1a0] sm:$0xff]
      %v223 = vld [vmem:[%s158 + $0x1b0] sm:$0xff]
      %v224 = vld [vmem:[%s158 + $0x1c0] sm:$0xff]
      %v225 = vld [vmem:[%s158 + $0x1d0] sm:$0xff]
      %v226 = vld [vmem:[%s158 + $0x1e0] sm:$0xff]
      %v227 = vld [vmem:[%s158 + $0x1f0] sm:$0xff]
      %v228 = vmul.f32 %v164, %v196
      %v229 = vmul.f32 %v165, %v197
      %v230 = vmul.f32 %v166, %v198
      %v231 = vmul.f32 %v167, %v199
      %v232 = vmul.f32 %v168, %v200
      %v233 = vmul.f32 %v169, %v201
      %v234 = vmul.f32 %v170, %v202
      %v235 = vmul.f32 %v171, %v203
      %v236 = vmul.f32 %v172, %v204
      %v237 = vmul.f32 %v173, %v205
      %v238 = vmul.f32 %v174, %v206
      %v239 = vmul.f32 %v175, %v207
      %v240 = vmul.f32 %v176, %v208
      %v241 = vmul.f32 %v177, %v209
      %v242 = vmul.f32 %v178, %v210
      %v243 = vmul.f32 %v179, %v211
      %v244 = vmul.f32 %v180, %v212
      %v245 = vmul.f32 %v181, %v213
      %v246 = vmul.f32 %v182, %v214
      %v247 = vmul.f32 %v183, %v215
      %v248 = vmul.f32 %v184, %v216
      %v249 = vmul.f32 %v185, %v217
      %v250 = vmul.f32 %v186, %v218
      %v251 = vmul.f32 %v187, %v219
      %v252 = vmul.f32 %v188, %v220
      %v253 = vmul.f32 %v189, %v221
      %v254 = vmul.f32 %v190, %v222
      %v255 = vmul.f32 %v191, %v223
      %v256 = vmul.f32 %v192, %v224
      %v257 = vmul.f32 %v193, %v225
      %v258 = vmul.f32 %v194, %v226
      %v259 = vmul.f32 %v195, %v227
      %vm260 = vcmask 64512
      %v261 = vsel %vm260, %v228, 0.0
      %v262 = vsel %vm260, %v229, 0.0
      %v263 = vadd.f32 %v261, %v262
      %v264 = vsel %vm260, %v230, 0.0
      %v265 = vadd.f32 %v263, %v264
      %v266 = vsel %vm260, %v231, 0.0
      %v267 = vadd.f32 %v265, %v266
      %v268 = vsel %vm260, %v232, 0.0
      %v269 = vadd.f32 %v267, %v268
      %v270 = vsel %vm260, %v233, 0.0
      %v271 = vadd.f32 %v269, %v270
      %v272 = vsel %vm260, %v234, 0.0
      %v273 = vadd.f32 %v271, %v272
      %v274 = vsel %vm260, %v235, 0.0
      %v275 = vadd.f32 %v273, %v274
      %v276 = vsel %vm260, %v236, 0.0
      %v277 = vadd.f32 %v275, %v276
      %v278 = vsel %vm260, %v237, 0.0
      %v279 = vadd.f32 %v277, %v278
      %v280 = vsel %vm260, %v238, 0.0
      %v281 = vadd.f32 %v279, %v280
      %v282 = vsel %vm260, %v239, 0.0
      %v283 = vadd.f32 %v281, %v282
      %v284 = vsel %vm260, %v240, 0.0
      %v285 = vadd.f32 %v283, %v284
      %v286 = vsel %vm260, %v241, 0.0
      %v287 = vadd.f32 %v285, %v286
      %v288 = vsel %vm260, %v242, 0.0
      %v289 = vadd.f32 %v287, %v288
      %v290 = vsel %vm260, %v243, 0.0
      %v291 = vadd.f32 %v289, %v290
      %v292 = vsel %vm260, %v244, 0.0
      %v293 = vadd.f32 %v291, %v292
      %v294 = vsel %vm260, %v245, 0.0
      %v295 = vadd.f32 %v293, %v294
      %v296 = vsel %vm260, %v246, 0.0
      %v297 = vadd.f32 %v295, %v296
      %v298 = vsel %vm260, %v247, 0.0
      %v299 = vadd.f32 %v297, %v298
      %v300 = vsel %vm260, %v248, 0.0
      %v301 = vadd.f32 %v299, %v300
      %v302 = vsel %vm260, %v249, 0.0
      %v303 = vadd.f32 %v301, %v302
      %v304 = vsel %vm260, %v250, 0.0
      %v305 = vadd.f32 %v303, %v304
      %v306 = vsel %vm260, %v251, 0.0
      %v307 = vadd.f32 %v305, %v306
      %v308 = vsel %vm260, %v252, 0.0
      %v309 = vadd.f32 %v307, %v308
      %v310 = vsel %vm260, %v253, 0.0
      %v311 = vadd.f32 %v309, %v310
      %v312 = vsel %vm260, %v254, 0.0
      %v313 = vadd.f32 %v311, %v312
      %v314 = vsel %vm260, %v255, 0.0
      %v315 = vadd.f32 %v313, %v314
      %v316 = vsel %vm260, %v256, 0.0
      %v317 = vadd.f32 %v315, %v316
      %v318 = vsel %vm260, %v257, 0.0
      %v319 = vadd.f32 %v317, %v318
      %v320 = vsel %vm260, %v258, 0.0
      %v321 = vadd.f32 %v319, %v320
      %v322 = vsel %vm260, %v259, 0.0
      %v323 = vadd.f32 %v321, %v322
      %v324 = vmul.f32 %v323, 0.03125
      %325 = vst.msk [vmem:[%s163] sm:$0xff] %vm260, %v324
      %v326 = vld [vmem:[%s158] sm:$0xff]
      %v327 = vld [vmem:[%s158 + $0x10] sm:$0xff]
      %v328 = vld [vmem:[%s158 + $0x20] sm:$0xff]
      %v329 = vld [vmem:[%s158 + $0x30] sm:$0xff]
      %v330 = vld [vmem:[%s158 + $0x40] sm:$0xff]
      %v331 = vld [vmem:[%s158 + $0x50] sm:$0xff]
      %v332 = vld [vmem:[%s158 + $0x60] sm:$0xff]
      %v333 = vld [vmem:[%s158 + $0x70] sm:$0xff]
      %v334 = vld [vmem:[%s158 + $0x80] sm:$0xff]
      %v335 = vld [vmem:[%s158 + $0x90] sm:$0xff]
      %v336 = vld [vmem:[%s158 + $0xa0] sm:$0xff]
      %v337 = vld [vmem:[%s158 + $0xb0] sm:$0xff]
      %v338 = vld [vmem:[%s158 + $0xc0] sm:$0xff]
      %v339 = vld [vmem:[%s158 + $0xd0] sm:$0xff]
      %v340 = vld [vmem:[%s158 + $0xe0] sm:$0xff]
      %v341 = vld [vmem:[%s158 + $0xf0] sm:$0xff]
      %v342 = vld [vmem:[%s158 + $0x100] sm:$0xff]
      %v343 = vld [vmem:[%s158 + $0x110] sm:$0xff]
      %v344 = vld [vmem:[%s158 + $0x120] sm:$0xff]
      %v345 = vld [vmem:[%s158 + $0x130] sm:$0xff]
      %v346 = vld [vmem:[%s158 + $0x140] sm:$0xff]
      %v347 = vld [vmem:[%s158 + $0x150] sm:$0xff]
      %v348 = vld [vmem:[%s158 + $0x160] sm:$0xff]
      %v349 = vld [vmem:[%s158 + $0x170] sm:$0xff]
      %v350 = vld [vmem:[%s158 + $0x180] sm:$0xff]
      %v351 = vld [vmem:[%s158 + $0x190] sm:$0xff]
      %v352 = vld [vmem:[%s158 + $0x1a0] sm:$0xff]
      %v353 = vld [vmem:[%s158 + $0x1b0] sm:$0xff]
      %v354 = vld [vmem:[%s158 + $0x1c0] sm:$0xff]
      %v355 = vld [vmem:[%s158 + $0x1d0] sm:$0xff]
      %v356 = vld [vmem:[%s158 + $0x1e0] sm:$0xff]
      %v357 = vld [vmem:[%s158 + $0x1f0] sm:$0xff]
      %390 = vrot.lane.b32.xlu0 %v326, 127
      %v391 = vpop.permute.xlu0 %390
      %392 = vrot.lane.b32.xlu0 %v327, 127
      %v393 = vpop.permute.xlu0 %392
      %394 = vrot.lane.b32.xlu0 %v328, 127
      %v395 = vpop.permute.xlu0 %394
      %396 = vrot.lane.b32.xlu0 %v329, 127
      %v397 = vpop.permute.xlu0 %396
      %398 = vrot.lane.b32.xlu0 %v330, 127
      %v399 = vpop.permute.xlu0 %398
      %400 = vrot.lane.b32.xlu0 %v331, 127
      %v401 = vpop.permute.xlu0 %400
      %402 = vrot.lane.b32.xlu0 %v332, 127
      %v403 = vpop.permute.xlu0 %402
      %404 = vrot.lane.b32.xlu0 %v333, 127
      %v405 = vpop.permute.xlu0 %404
      %406 = vrot.lane.b32.xlu0 %v334, 127
      %v407 = vpop.permute.xlu0 %406
      %408 = vrot.lane.b32.xlu0 %v335, 127
      %v409 = vpop.permute.xlu0 %408
      %410 = vrot.lane.b32.xlu0 %v336, 127
      %v411 = vpop.permute.xlu0 %410
      %412 = vrot.lane.b32.xlu0 %v337, 127
      %v413 = vpop.permute.xlu0 %412
      %414 = vrot.lane.b32.xlu0 %v338, 127
      %v415 = vpop.permute.xlu0 %414
      %416 = vrot.lane.b32.xlu0 %v339, 127
      %v417 = vpop.permute.xlu0 %416
      %418 = vrot.lane.b32.xlu0 %v340, 127
      %v419 = vpop.permute.xlu0 %418
      %420 = vrot.lane.b32.xlu0 %v341, 127
      %v421 = vpop.permute.xlu0 %420
      %422 = vrot.lane.b32.xlu0 %v342, 127
      %v423 = vpop.permute.xlu0 %422
      %424 = vrot.lane.b32.xlu0 %v343, 127
      %v425 = vpop.permute.xlu0 %424
      %426 = vrot.lane.b32.xlu0 %v344, 127
      %v427 = vpop.permute.xlu0 %426
      %428 = vrot.lane.b32.xlu0 %v345, 127
      %v429 = vpop.permute.xlu0 %428
      %430 = vrot.lane.b32.xlu0 %v346, 127
      %v431 = vpop.permute.xlu0 %430
      %432 = vrot.lane.b32.xlu0 %v347, 127
      %v433 = vpop.permute.xlu0 %432
      %434 = vrot.lane.b32.xlu0 %v348, 127
      %v435 = vpop.permute.xlu0 %434
      %436 = vrot.lane.b32.xlu0 %v349, 127
      %v437 = vpop.permute.xlu0 %436
      %438 = vrot.lane.b32.xlu0 %v350, 127
      %v439 = vpop.permute.xlu0 %438
      %440 = vrot.lane.b32.xlu0 %v351, 127
      %v441 = vpop.permute.xlu0 %440
      %442 = vrot.lane.b32.xlu0 %v352, 127
      %v443 = vpop.permute.xlu0 %442
      %444 = vrot.lane.b32.xlu0 %v353, 127
      %v445 = vpop.permute.xlu0 %444
      %446 = vrot.lane.b32.xlu0 %v354, 127
      %v447 = vpop.permute.xlu0 %446
      %448 = vrot.lane.b32.xlu0 %v355, 127
      %v449 = vpop.permute.xlu0 %448
      %450 = vrot.lane.b32.xlu0 %v356, 127
      %v451 = vpop.permute.xlu0 %450
      %452 = vrot.lane.b32.xlu0 %v357, 127
      %v453 = vpop.permute.xlu0 %452
      %v486 = vmul.f32 %v164, %v391
      %v487 = vmul.f32 %v165, %v393
      %v488 = vmul.f32 %v166, %v395
      %v489 = vmul.f32 %v167, %v397
      %v490 = vmul.f32 %v168, %v399
      %v491 = vmul.f32 %v169, %v401
      %v492 = vmul.f32 %v170, %v403
      %v493 = vmul.f32 %v171, %v405
      %v494 = vmul.f32 %v172, %v407
      %v495 = vmul.f32 %v173, %v409
      %v496 = vmul.f32 %v174, %v411
      %v497 = vmul.f32 %v175, %v413
      %v498 = vmul.f32 %v176, %v415
      %v499 = vmul.f32 %v177, %v417
      %v500 = vmul.f32 %v178, %v419
      %v501 = vmul.f32 %v179, %v421
      %v502 = vmul.f32 %v180, %v423
      %v503 = vmul.f32 %v181, %v425
      %v504 = vmul.f32 %v182, %v427
      %v505 = vmul.f32 %v183, %v429
      %v506 = vmul.f32 %v184, %v431
      %v507 = vmul.f32 %v185, %v433
      %v508 = vmul.f32 %v186, %v435
      %v509 = vmul.f32 %v187, %v437
      %v510 = vmul.f32 %v188, %v439
      %v511 = vmul.f32 %v189, %v441
      %v512 = vmul.f32 %v190, %v443
      %v513 = vmul.f32 %v191, %v445
      %v514 = vmul.f32 %v192, %v447
      %v515 = vmul.f32 %v193, %v449
      %v516 = vmul.f32 %v194, %v451
      %v517 = vmul.f32 %v195, %v453
      %v518 = vsel %vm260, %v486, 0.0
      %v519 = vsel %vm260, %v487, 0.0
      %v520 = vadd.f32 %v518, %v519
      %v521 = vsel %vm260, %v488, 0.0
      %v522 = vadd.f32 %v520, %v521
      %v523 = vsel %vm260, %v489, 0.0
      %v524 = vadd.f32 %v522, %v523
      %v525 = vsel %vm260, %v490, 0.0
      %v526 = vadd.f32 %v524, %v525
      %v527 = vsel %vm260, %v491, 0.0
      %v528 = vadd.f32 %v526, %v527
      %v529 = vsel %vm260, %v492, 0.0
      %v530 = vadd.f32 %v528, %v529
      %v531 = vsel %vm260, %v493, 0.0
      %v532 = vadd.f32 %v530, %v531
      %v533 = vsel %vm260, %v494, 0.0
      %v534 = vadd.f32 %v532, %v533
      %v535 = vsel %vm260, %v495, 0.0
      %v536 = vadd.f32 %v534, %v535
      %v537 = vsel %vm260, %v496, 0.0
      %v538 = vadd.f32 %v536, %v537
      %v539 = vsel %vm260, %v497, 0.0
      %v540 = vadd.f32 %v538, %v539
      %v541 = vsel %vm260, %v498, 0.0
      %v542 = vadd.f32 %v540, %v541
      %v543 = vsel %vm260, %v499, 0.0
      %v544 = vadd.f32 %v542, %v543
      %v545 = vsel %vm260, %v500, 0.0
      %v546 = vadd.f32 %v544, %v545
      %v547 = vsel %vm260, %v501, 0.0
      %v548 = vadd.f32 %v546, %v547
      %v549 = vsel %vm260, %v502, 0.0
      %v550 = vadd.f32 %v548, %v549
      %v551 = vsel %vm260, %v503, 0.0
      %v552 = vadd.f32 %v550, %v551
      %v553 = vsel %vm260, %v504, 0.0
      %v554 = vadd.f32 %v552, %v553
      %v555 = vsel %vm260, %v505, 0.0
      %v556 = vadd.f32 %v554, %v555
      %v557 = vsel %vm260, %v506, 0.0
      %v558 = vadd.f32 %v556, %v557
      %v559 = vsel %vm260, %v507, 0.0
      %v560 = vadd.f32 %v558, %v559
      %v561 = vsel %vm260, %v508, 0.0
      %v562 = vadd.f32 %v560, %v561
      %v563 = vsel %vm260, %v509, 0.0
      %v564 = vadd.f32 %v562, %v563
      %v565 = vsel %vm260, %v510, 0.0
      %v566 = vadd.f32 %v564, %v565
      %v567 = vsel %vm260, %v511, 0.0
      %v568 = vadd.f32 %v566, %v567
      %v569 = vsel %vm260, %v512, 0.0
      %v570 = vadd.f32 %v568, %v569
      %v571 = vsel %vm260, %v513, 0.0
      %v572 = vadd.f32 %v570, %v571
      %v573 = vsel %vm260, %v514, 0.0
      %v574 = vadd.f32 %v572, %v573
      %v575 = vsel %vm260, %v515, 0.0
      %v576 = vadd.f32 %v574, %v575
      %v577 = vsel %vm260, %v516, 0.0
      %v578 = vadd.f32 %v576, %v577
      %v579 = vsel %vm260, %v517, 0.0
      %v580 = vadd.f32 %v578, %v579
      %v581 = vmul.f32 %v580, 0.03125
      %s582 = scalar_lea.vmem %s163, 8
      %583 = vst.msk [vmem:[%s582] sm:$0xff] %vm260, %v581
      %v584 = vld [vmem:[%s158] sm:$0xff]
      %v585 = vld [vmem:[%s158 + $0x10] sm:$0xff]
      %v586 = vld [vmem:[%s158 + $0x20] sm:$0xff]
      %v587 = vld [vmem:[%s158 + $0x30] sm:$0xff]
      %v588 = vld [vmem:[%s158 + $0x40] sm:$0xff]
      %v589 = vld [vmem:[%s158 + $0x50] sm:$0xff]
      %v590 = vld [vmem:[%s158 + $0x60] sm:$0xff]
      %v591 = vld [vmem:[%s158 + $0x70] sm:$0xff]
      %v592 = vld [vmem:[%s158 + $0x80] sm:$0xff]
      %v593 = vld [vmem:[%s158 + $0x90] sm:$0xff]
      %v594 = vld [vmem:[%s158 + $0xa0] sm:$0xff]
      %v595 = vld [vmem:[%s158 + $0xb0] sm:$0xff]
      %v596 = vld [vmem:[%s158 + $0xc0] sm:$0xff]
      %v597 = vld [vmem:[%s158 + $0xd0] sm:$0xff]
      %v598 = vld [vmem:[%s158 + $0xe0] sm:$0xff]
      %v599 = vld [vmem:[%s158 + $0xf0] sm:$0xff]
      %v600 = vld [vmem:[%s158 + $0x100] sm:$0xff]
      %v601 = vld [vmem:[%s158 + $0x110] sm:$0xff]
      %v602 = vld [vmem:[%s158 + $0x120] sm:$0xff]
      %v603 = vld [vmem:[%s158 + $0x130] sm:$0xff]
      %v604 = vld [vmem:[%s158 + $0x140] sm:$0xff]
      %v605 = vld [vmem:[%s158 + $0x150] sm:$0xff]
      %v606 = vld [vmem:[%s158 + $0x160] sm:$0xff]
      %v607 = vld [vmem:[%s158 + $0x170] sm:$0xff]
      %v608 = vld [vmem:[%s158 + $0x180] sm:$0xff]
      %v609 = vld [vmem:[%s158 + $0x190] sm:$0xff]
      %v610 = vld [vmem:[%s158 + $0x1a0] sm:$0xff]
      %v611 = vld [vmem:[%s158 + $0x1b0] sm:$0xff]
      %v612 = vld [vmem:[%s158 + $0x1c0] sm:$0xff]
      %v613 = vld [vmem:[%s158 + $0x1d0] sm:$0xff]
      %v614 = vld [vmem:[%s158 + $0x1e0] sm:$0xff]
      %v615 = vld [vmem:[%s158 + $0x1f0] sm:$0xff]
      %648 = vrot.lane.b32.xlu0 %v584, 126
      %v649 = vpop.permute.xlu0 %648
      %650 = vrot.lane.b32.xlu0 %v585, 126
      %v651 = vpop.permute.xlu0 %650
      %652 = vrot.lane.b32.xlu0 %v586, 126
      %v653 = vpop.permute.xlu0 %652
      %654 = vrot.lane.b32.xlu0 %v587, 126
      %v655 = vpop.permute.xlu0 %654
      %656 = vrot.lane.b32.xlu0 %v588, 126
      %v657 = vpop.permute.xlu0 %656
      %658 = vrot.lane.b32.xlu0 %v589, 126
      %v659 = vpop.permute.xlu0 %658
      %660 = vrot.lane.b32.xlu0 %v590, 126
      %v661 = vpop.permute.xlu0 %660
      %662 = vrot.lane.b32.xlu0 %v591, 126
      %v663 = vpop.permute.xlu0 %662
      %664 = vrot.lane.b32.xlu0 %v592, 126
      %v665 = vpop.permute.xlu0 %664
      %666 = vrot.lane.b32.xlu0 %v593, 126
      %v667 = vpop.permute.xlu0 %666
      %668 = vrot.lane.b32.xlu0 %v594, 126
      %v669 = vpop.permute.xlu0 %668
      %670 = vrot.lane.b32.xlu0 %v595, 126
      %v671 = vpop.permute.xlu0 %670
      %672 = vrot.lane.b32.xlu0 %v596, 126
      %v673 = vpop.permute.xlu0 %672
      %674 = vrot.lane.b32.xlu0 %v597, 126
      %v675 = vpop.permute.xlu0 %674
      %676 = vrot.lane.b32.xlu0 %v598, 126
      %v677 = vpop.permute.xlu0 %676
      %678 = vrot.lane.b32.xlu0 %v599, 126
      %v679 = vpop.permute.xlu0 %678
      %680 = vrot.lane.b32.xlu0 %v600, 126
      %v681 = vpop.permute.xlu0 %680
      %682 = vrot.lane.b32.xlu0 %v601, 126
      %v683 = vpop.permute.xlu0 %682
      %684 = vrot.lane.b32.xlu0 %v602, 126
      %v685 = vpop.permute.xlu0 %684
      %686 = vrot.lane.b32.xlu0 %v603, 126
      %v687 = vpop.permute.xlu0 %686
      %688 = vrot.lane.b32.xlu0 %v604, 126
      %v689 = vpop.permute.xlu0 %688
      %690 = vrot.lane.b32.xlu0 %v605, 126
      %v691 = vpop.permute.xlu0 %690
      %692 = vrot.lane.b32.xlu0 %v606, 126
      %v693 = vpop.permute.xlu0 %692
      %694 = vrot.lane.b32.xlu0 %v607, 126
      %v695 = vpop.permute.xlu0 %694
      %696 = vrot.lane.b32.xlu0 %v608, 126
      %v697 = vpop.permute.xlu0 %696
      %698 = vrot.lane.b32.xlu0 %v609, 126
      %v699 = vpop.permute.xlu0 %698
      %700 = vrot.lane.b32.xlu0 %v610, 126
      %v701 = vpop.permute.xlu0 %700
      %702 = vrot.lane.b32.xlu0 %v611, 126
      %v703 = vpop.permute.xlu0 %702
      %704 = vrot.lane.b32.xlu0 %v612, 126
      %v705 = vpop.permute.xlu0 %704
      %706 = vrot.lane.b32.xlu0 %v613, 126
      %v707 = vpop.permute.xlu0 %706
      %708 = vrot.lane.b32.xlu0 %v614, 126
      %v709 = vpop.permute.xlu0 %708
      %710 = vrot.lane.b32.xlu0 %v615, 126
      %v711 = vpop.permute.xlu0 %710
      %v744 = vmul.f32 %v164, %v649
      %v745 = vmul.f32 %v165, %v651
      %v746 = vmul.f32 %v166, %v653
      %v747 = vmul.f32 %v167, %v655
      %v748 = vmul.f32 %v168, %v657
      %v749 = vmul.f32 %v169, %v659
      %v750 = vmul.f32 %v170, %v661
      %v751 = vmul.f32 %v171, %v663
      %v752 = vmul.f32 %v172, %v665
      %v753 = vmul.f32 %v173, %v667
      %v754 = vmul.f32 %v174, %v669
      %v755 = vmul.f32 %v175, %v671
      %v756 = vmul.f32 %v176, %v673
      %v757 = vmul.f32 %v177, %v675
      %v758 = vmul.f32 %v178, %v677
      %v759 = vmul.f32 %v179, %v679
      %v760 = vmul.f32 %v180, %v681
      %v761 = vmul.f32 %v181, %v683
      %v762 = vmul.f32 %v182, %v685
      %v763 = vmul.f32 %v183, %v687
      %v764 = vmul.f32 %v184, %v689
      %v765 = vmul.f32 %v185, %v691
      %v766 = vmul.f32 %v186, %v693
      %v767 = vmul.f32 %v187, %v695
      %v768 = vmul.f32 %v188, %v697
      %v769 = vmul.f32 %v189, %v699
      %v770 = vmul.f32 %v190, %v701
      %v771 = vmul.f32 %v191, %v703
      %v772 = vmul.f32 %v192, %v705
      %v773 = vmul.f32 %v193, %v707
      %v774 = vmul.f32 %v194, %v709
      %v775 = vmul.f32 %v195, %v711
      %v776 = vsel %vm260, %v744, 0.0
      %v777 = vsel %vm260, %v745, 0.0
      %v778 = vadd.f32 %v776, %v777
      %v779 = vsel %vm260, %v746, 0.0
      %v780 = vadd.f32 %v778, %v779
      %v781 = vsel %vm260, %v747, 0.0
      %v782 = vadd.f32 %v780, %v781
      %v783 = vsel %vm260, %v748, 0.0
      %v784 = vadd.f32 %v782, %v783
      %v785 = vsel %vm260, %v749, 0.0
      %v786 = vadd.f32 %v784, %v785
      %v787 = vsel %vm260, %v750, 0.0
      %v788 = vadd.f32 %v786, %v787
      %v789 = vsel %vm260, %v751, 0.0
      %v790 = vadd.f32 %v788, %v789
      %v791 = vsel %vm260, %v752, 0.0
      %v792 = vadd.f32 %v790, %v791
      %v793 = vsel %vm260, %v753, 0.0
      %v794 = vadd.f32 %v792, %v793
      %v795 = vsel %vm260, %v754, 0.0
      %v796 = vadd.f32 %v794, %v795
      %v797 = vsel %vm260, %v755, 0.0
      %v798 = vadd.f32 %v796, %v797
      %v799 = vsel %vm260, %v756, 0.0
      %v800 = vadd.f32 %v798, %v799
      %v801 = vsel %vm260, %v757, 0.0
      %v802 = vadd.f32 %v800, %v801
      %v803 = vsel %vm260, %v758, 0.0
      %v804 = vadd.f32 %v802, %v803
      %v805 = vsel %vm260, %v759, 0.0
      %v806 = vadd.f32 %v804, %v805
      %v807 = vsel %vm260, %v760, 0.0
      %v808 = vadd.f32 %v806, %v807
      %v809 = vsel %vm260, %v761, 0.0
      %v810 = vadd.f32 %v808, %v809
      %v811 = vsel %vm260, %v762, 0.0
      %v812 = vadd.f32 %v810, %v811
      %v813 = vsel %vm260, %v763, 0.0
      %v814 = vadd.f32 %v812, %v813
      %v815 = vsel %vm260, %v764, 0.0
      %v816 = vadd.f32 %v814, %v815
      %v817 = vsel %vm260, %v765, 0.0
      %v818 = vadd.f32 %v816, %v817
      %v819 = vsel %vm260, %v766, 0.0
      %v820 = vadd.f32 %v818, %v819
      %v821 = vsel %vm260, %v767, 0.0
      %v822 = vadd.f32 %v820, %v821
      %v823 = vsel %vm260, %v768, 0.0
      %v824 = vadd.f32 %v822, %v823
      %v825 = vsel %vm260, %v769, 0.0
      %v826 = vadd.f32 %v824, %v825
      %v827 = vsel %vm260, %v770, 0.0
      %v828 = vadd.f32 %v826, %v827
      %v829 = vsel %vm260, %v771, 0.0
      %v830 = vadd.f32 %v828, %v829
      %v831 = vsel %vm260, %v772, 0.0
      %v832 = vadd.f32 %v830, %v831
      %v833 = vsel %vm260, %v773, 0.0
      %v834 = vadd.f32 %v832, %v833
      %v835 = vsel %vm260, %v774, 0.0
      %v836 = vadd.f32 %v834, %v835
      %v837 = vsel %vm260, %v775, 0.0
      %v838 = vadd.f32 %v836, %v837
      %v839 = vmul.f32 %v838, 0.03125
      %s840 = scalar_lea.vmem %s163, 16
      %841 = vst.msk [vmem:[%s840] sm:$0xff] %vm260, %v839
      %v842 = vld [vmem:[%s158 + $0x1] sm:$0xff]
      %v843 = vld [vmem:[%s158 + $0x11] sm:$0xff]
      %v844 = vld [vmem:[%s158 + $0x21] sm:$0xff]
      %v845 = vld [vmem:[%s158 + $0x31] sm:$0xff]
      %v846 = vld [vmem:[%s158 + $0x41] sm:$0xff]
      %v847 = vld [vmem:[%s158 + $0x51] sm:$0xff]
      %v848 = vld [vmem:[%s158 + $0x61] sm:$0xff]
      %v849 = vld [vmem:[%s158 + $0x71] sm:$0xff]
      %v850 = vld [vmem:[%s158 + $0x81] sm:$0xff]
      %v851 = vld [vmem:[%s158 + $0x91] sm:$0xff]
      %v852 = vld [vmem:[%s158 + $0xa1] sm:$0xff]
      %v853 = vld [vmem:[%s158 + $0xb1] sm:$0xff]
      %v854 = vld [vmem:[%s158 + $0xc1] sm:$0xff]
      %v855 = vld [vmem:[%s158 + $0xd1] sm:$0xff]
      %v856 = vld [vmem:[%s158 + $0xe1] sm:$0xff]
      %v857 = vld [vmem:[%s158 + $0xf1] sm:$0xff]
      %v858 = vld [vmem:[%s158 + $0x101] sm:$0xff]
      %v859 = vld [vmem:[%s158 + $0x111] sm:$0xff]
      %v860 = vld [vmem:[%s158 + $0x121] sm:$0xff]
      %v861 = vld [vmem:[%s158 + $0x131] sm:$0xff]
      %v862 = vld [vmem:[%s158 + $0x141] sm:$0xff]
      %v863 = vld [vmem:[%s158 + $0x151] sm:$0xff]
      %v864 = vld [vmem:[%s158 + $0x161] sm:$0xff]
      %v865 = vld [vmem:[%s158 + $0x171] sm:$0xff]
      %v866 = vld [vmem:[%s158 + $0x181] sm:$0xff]
      %v867 = vld [vmem:[%s158 + $0x191] sm:$0xff]
      %v868 = vld [vmem:[%s158 + $0x1a1] sm:$0xff]
      %v869 = vld [vmem:[%s158 + $0x1b1] sm:$0xff]
      %v870 = vld [vmem:[%s158 + $0x1c1] sm:$0xff]
      %v871 = vld [vmem:[%s158 + $0x1d1] sm:$0xff]
      %v872 = vld [vmem:[%s158 + $0x1e1] sm:$0xff]
      %v873 = vld [vmem:[%s158 + $0x1f1] sm:$0xff]
      %v874 = vmul.f32 %v164, %v842
      %v875 = vmul.f32 %v165, %v843
      %v876 = vmul.f32 %v166, %v844
      %v877 = vmul.f32 %v167, %v845
      %v878 = vmul.f32 %v168, %v846
      %v879 = vmul.f32 %v169, %v847
      %v880 = vmul.f32 %v170, %v848
      %v881 = vmul.f32 %v171, %v849
      %v882 = vmul.f32 %v172, %v850
      %v883 = vmul.f32 %v173, %v851
      %v884 = vmul.f32 %v174, %v852
      %v885 = vmul.f32 %v175, %v853
      %v886 = vmul.f32 %v176, %v854
      %v887 = vmul.f32 %v177, %v855
      %v888 = vmul.f32 %v178, %v856
      %v889 = vmul.f32 %v179, %v857
      %v890 = vmul.f32 %v180, %v858
      %v891 = vmul.f32 %v181, %v859
      %v892 = vmul.f32 %v182, %v860
      %v893 = vmul.f32 %v183, %v861
      %v894 = vmul.f32 %v184, %v862
      %v895 = vmul.f32 %v185, %v863
      %v896 = vmul.f32 %v186, %v864
      %v897 = vmul.f32 %v187, %v865
      %v898 = vmul.f32 %v188, %v866
      %v899 = vmul.f32 %v189, %v867
      %v900 = vmul.f32 %v190, %v868
      %v901 = vmul.f32 %v191, %v869
      %v902 = vmul.f32 %v192, %v870
      %v903 = vmul.f32 %v193, %v871
      %v904 = vmul.f32 %v194, %v872
      %v905 = vmul.f32 %v195, %v873
      %v906 = vsel %vm260, %v874, 0.0
      %v907 = vsel %vm260, %v875, 0.0
      %v908 = vadd.f32 %v906, %v907
      %v909 = vsel %vm260, %v876, 0.0
      %v910 = vadd.f32 %v908, %v909
      %v911 = vsel %vm260, %v877, 0.0
      %v912 = vadd.f32 %v910, %v911
      %v913 = vsel %vm260, %v878, 0.0
      %v914 = vadd.f32 %v912, %v913
      %v915 = vsel %vm260, %v879, 0.0
      %v916 = vadd.f32 %v914, %v915
      %v917 = vsel %vm260, %v880, 0.0
      %v918 = vadd.f32 %v916, %v917
      %v919 = vsel %vm260, %v881, 0.0
      %v920 = vadd.f32 %v918, %v919
      %v921 = vsel %vm260, %v882, 0.0
      %v922 = vadd.f32 %v920, %v921
      %v923 = vsel %vm260, %v883, 0.0
      %v924 = vadd.f32 %v922, %v923
      %v925 = vsel %vm260, %v884, 0.0
      %v926 = vadd.f32 %v924, %v925
      %v927 = vsel %vm260, %v885, 0.0
      %v928 = vadd.f32 %v926, %v927
      %v929 = vsel %vm260, %v886, 0.0
      %v930 = vadd.f32 %v928, %v929
      %v931 = vsel %vm260, %v887, 0.0
      %v932 = vadd.f32 %v930, %v931
      %v933 = vsel %vm260, %v888, 0.0
      %v934 = vadd.f32 %v932, %v933
      %v935 = vsel %vm260, %v889, 0.0
      %v936 = vadd.f32 %v934, %v935
      %v937 = vsel %vm260, %v890, 0.0
      %v938 = vadd.f32 %v936, %v937
      %v939 = vsel %vm260, %v891, 0.0
      %v940 = vadd.f32 %v938, %v939
      %v941 = vsel %vm260, %v892, 0.0
      %v942 = vadd.f32 %v940, %v941
      %v943 = vsel %vm260, %v893, 0.0
      %v944 = vadd.f32 %v942, %v943
      %v945 = vsel %vm260, %v894, 0.0
      %v946 = vadd.f32 %v944, %v945
      %v947 = vsel %vm260, %v895, 0.0
      %v948 = vadd.f32 %v946, %v947
      %v949 = vsel %vm260, %v896, 0.0
      %v950 = vadd.f32 %v948, %v949
      %v951 = vsel %vm260, %v897, 0.0
      %v952 = vadd.f32 %v950, %v951
      %v953 = vsel %vm260, %v898, 0.0
      %v954 = vadd.f32 %v952, %v953
      %v955 = vsel %vm260, %v899, 0.0
      %v956 = vadd.f32 %v954, %v955
      %v957 = vsel %vm260, %v900, 0.0
      %v958 = vadd.f32 %v956, %v957
      %v959 = vsel %vm260, %v901, 0.0
      %v960 = vadd.f32 %v958, %v959
      %v961 = vsel %vm260, %v902, 0.0
      %v962 = vadd.f32 %v960, %v961
      %v963 = vsel %vm260, %v903, 0.0
      %v964 = vadd.f32 %v962, %v963
      %v965 = vsel %vm260, %v904, 0.0
      %v966 = vadd.f32 %v964, %v965
      %v967 = vsel %vm260, %v905, 0.0
      %v968 = vadd.f32 %v966, %v967
      %v969 = vmul.f32 %v968, 0.03125
      %s970 = scalar_lea.vmem %s163, 24
      %971 = vst.msk [vmem:[%s970] sm:$0xff] %vm260, %v969
      %v972 = vld [vmem:[%s158 + $0x1] sm:$0xff]
      %v973 = vld [vmem:[%s158 + $0x11] sm:$0xff]
      %v974 = vld [vmem:[%s158 + $0x21] sm:$0xff]
      %v975 = vld [vmem:[%s158 + $0x31] sm:$0xff]
      %v976 = vld [vmem:[%s158 + $0x41] sm:$0xff]
      %v977 = vld [vmem:[%s158 + $0x51] sm:$0xff]
      %v978 = vld [vmem:[%s158 + $0x61] sm:$0xff]
      %v979 = vld [vmem:[%s158 + $0x71] sm:$0xff]
      %v980 = vld [vmem:[%s158 + $0x81] sm:$0xff]
      %v981 = vld [vmem:[%s158 + $0x91] sm:$0xff]
      %v982 = vld [vmem:[%s158 + $0xa1] sm:$0xff]
      %v983 = vld [vmem:[%s158 + $0xb1] sm:$0xff]
      %v984 = vld [vmem:[%s158 + $0xc1] sm:$0xff]
      %v985 = vld [vmem:[%s158 + $0xd1] sm:$0xff]
      %v986 = vld [vmem:[%s158 + $0xe1] sm:$0xff]
      %v987 = vld [vmem:[%s158 + $0xf1] sm:$0xff]
      %v988 = vld [vmem:[%s158 + $0x101] sm:$0xff]
      %v989 = vld [vmem:[%s158 + $0x111] sm:$0xff]
      %v990 = vld [vmem:[%s158 + $0x121] sm:$0xff]
      %v991 = vld [vmem:[%s158 + $0x131] sm:$0xff]
      %v992 = vld [vmem:[%s158 + $0x141] sm:$0xff]
      %v993 = vld [vmem:[%s158 + $0x151] sm:$0xff]
      %v994 = vld [vmem:[%s158 + $0x161] sm:$0xff]
      %v995 = vld [vmem:[%s158 + $0x171] sm:$0xff]
      %v996 = vld [vmem:[%s158 + $0x181] sm:$0xff]
      %v997 = vld [vmem:[%s158 + $0x191] sm:$0xff]
      %v998 = vld [vmem:[%s158 + $0x1a1] sm:$0xff]
      %v999 = vld [vmem:[%s158 + $0x1b1] sm:$0xff]
      %v1000 = vld [vmem:[%s158 + $0x1c1] sm:$0xff]
      %v1001 = vld [vmem:[%s158 + $0x1d1] sm:$0xff]
      %v1002 = vld [vmem:[%s158 + $0x1e1] sm:$0xff]
      %v1003 = vld [vmem:[%s158 + $0x1f1] sm:$0xff]
      %1036 = vrot.lane.b32.xlu0 %v972, 127
      %v1037 = vpop.permute.xlu0 %1036
      %1038 = vrot.lane.b32.xlu0 %v973, 127
      %v1039 = vpop.permute.xlu0 %1038
      %1040 = vrot.lane.b32.xlu0 %v974, 127
      %v1041 = vpop.permute.xlu0 %1040
      %1042 = vrot.lane.b32.xlu0 %v975, 127
      %v1043 = vpop.permute.xlu0 %1042
      %1044 = vrot.lane.b32.xlu0 %v976, 127
      %v1045 = vpop.permute.xlu0 %1044
      %1046 = vrot.lane.b32.xlu0 %v977, 127
      %v1047 = vpop.permute.xlu0 %1046
      %1048 = vrot.lane.b32.xlu0 %v978, 127
      %v1049 = vpop.permute.xlu0 %1048
      %1050 = vrot.lane.b32.xlu0 %v979, 127
      %v1051 = vpop.permute.xlu0 %1050
      %1052 = vrot.lane.b32.xlu0 %v980, 127
      %v1053 = vpop.permute.xlu0 %1052
      %1054 = vrot.lane.b32.xlu0 %v981, 127
      %v1055 = vpop.permute.xlu0 %1054
      %1056 = vrot.lane.b32.xlu0 %v982, 127
      %v1057 = vpop.permute.xlu0 %1056
      %1058 = vrot.lane.b32.xlu0 %v983, 127
      %v1059 = vpop.permute.xlu0 %1058
      %1060 = vrot.lane.b32.xlu0 %v984, 127
      %v1061 = vpop.permute.xlu0 %1060
      %1062 = vrot.lane.b32.xlu0 %v985, 127
      %v1063 = vpop.permute.xlu0 %1062
      %1064 = vrot.lane.b32.xlu0 %v986, 127
      %v1065 = vpop.permute.xlu0 %1064
      %1066 = vrot.lane.b32.xlu0 %v987, 127
      %v1067 = vpop.permute.xlu0 %1066
      %1068 = vrot.lane.b32.xlu0 %v988, 127
      %v1069 = vpop.permute.xlu0 %1068
      %1070 = vrot.lane.b32.xlu0 %v989, 127
      %v1071 = vpop.permute.xlu0 %1070
      %1072 = vrot.lane.b32.xlu0 %v990, 127
      %v1073 = vpop.permute.xlu0 %1072
      %1074 = vrot.lane.b32.xlu0 %v991, 127
      %v1075 = vpop.permute.xlu0 %1074
      %1076 = vrot.lane.b32.xlu0 %v992, 127
      %v1077 = vpop.permute.xlu0 %1076
      %1078 = vrot.lane.b32.xlu0 %v993, 127
      %v1079 = vpop.permute.xlu0 %1078
      %1080 = vrot.lane.b32.xlu0 %v994, 127
      %v1081 = vpop.permute.xlu0 %1080
      %1082 = vrot.lane.b32.xlu0 %v995, 127
      %v1083 = vpop.permute.xlu0 %1082
      %1084 = vrot.lane.b32.xlu0 %v996, 127
      %v1085 = vpop.permute.xlu0 %1084
      %1086 = vrot.lane.b32.xlu0 %v997, 127
      %v1087 = vpop.permute.xlu0 %1086
      %1088 = vrot.lane.b32.xlu0 %v998, 127
      %v1089 = vpop.permute.xlu0 %1088
      %1090 = vrot.lane.b32.xlu0 %v999, 127
      %v1091 = vpop.permute.xlu0 %1090
      %1092 = vrot.lane.b32.xlu0 %v1000, 127
      %v1093 = vpop.permute.xlu0 %1092
      %1094 = vrot.lane.b32.xlu0 %v1001, 127
      %v1095 = vpop.permute.xlu0 %1094
      %1096 = vrot.lane.b32.xlu0 %v1002, 127
      %v1097 = vpop.permute.xlu0 %1096
      %1098 = vrot.lane.b32.xlu0 %v1003, 127
      %v1099 = vpop.permute.xlu0 %1098
      %v1132 = vmul.f32 %v164, %v1037
      %v1133 = vmul.f32 %v165, %v1039
      %v1134 = vmul.f32 %v166, %v1041
      %v1135 = vmul.f32 %v167, %v1043
      %v1136 = vmul.f32 %v168, %v1045
      %v1137 = vmul.f32 %v169, %v1047
      %v1138 = vmul.f32 %v170, %v1049
      %v1139 = vmul.f32 %v171, %v1051
      %v1140 = vmul.f32 %v172, %v1053
      %v1141 = vmul.f32 %v173, %v1055
      %v1142 = vmul.f32 %v174, %v1057
      %v1143 = vmul.f32 %v175, %v1059
      %v1144 = vmul.f32 %v176, %v1061
      %v1145 = vmul.f32 %v177, %v1063
      %v1146 = vmul.f32 %v178, %v1065
      %v1147 = vmul.f32 %v179, %v1067
      %v1148 = vmul.f32 %v180, %v1069
      %v1149 = vmul.f32 %v181, %v1071
      %v1150 = vmul.f32 %v182, %v1073
      %v1151 = vmul.f32 %v183, %v1075
      %v1152 = vmul.f32 %v184, %v1077
      %v1153 = vmul.f32 %v185, %v1079
      %v1154 = vmul.f32 %v186, %v1081
      %v1155 = vmul.f32 %v187, %v1083
      %v1156 = vmul.f32 %v188, %v1085
      %v1157 = vmul.f32 %v189, %v1087
      %v1158 = vmul.f32 %v190, %v1089
      %v1159 = vmul.f32 %v191, %v1091
      %v1160 = vmul.f32 %v192, %v1093
      %v1161 = vmul.f32 %v193, %v1095
      %v1162 = vmul.f32 %v194, %v1097
      %v1163 = vmul.f32 %v195, %v1099
      %v1164 = vsel %vm260, %v1132, 0.0
      %v1165 = vsel %vm260, %v1133, 0.0
      %v1166 = vadd.f32 %v1164, %v1165
      %v1167 = vsel %vm260, %v1134, 0.0
      %v1168 = vadd.f32 %v1166, %v1167
      %v1169 = vsel %vm260, %v1135, 0.0
      %v1170 = vadd.f32 %v1168, %v1169
      %v1171 = vsel %vm260, %v1136, 0.0
      %v1172 = vadd.f32 %v1170, %v1171
      %v1173 = vsel %vm260, %v1137, 0.0
      %v1174 = vadd.f32 %v1172, %v1173
      %v1175 = vsel %vm260, %v1138, 0.0
      %v1176 = vadd.f32 %v1174, %v1175
      %v1177 = vsel %vm260, %v1139, 0.0
      %v1178 = vadd.f32 %v1176, %v1177
      %v1179 = vsel %vm260, %v1140, 0.0
      %v1180 = vadd.f32 %v1178, %v1179
      %v1181 = vsel %vm260, %v1141, 0.0
      %v1182 = vadd.f32 %v1180, %v1181
      %v1183 = vsel %vm260, %v1142, 0.0
      %v1184 = vadd.f32 %v1182, %v1183
      %v1185 = vsel %vm260, %v1143, 0.0
      %v1186 = vadd.f32 %v1184, %v1185
      %v1187 = vsel %vm260, %v1144, 0.0
      %v1188 = vadd.f32 %v1186, %v1187
      %v1189 = vsel %vm260, %v1145, 0.0
      %v1190 = vadd.f32 %v1188, %v1189
      %v1191 = vsel %vm260, %v1146, 0.0
      %v1192 = vadd.f32 %v1190, %v1191
      %v1193 = vsel %vm260, %v1147, 0.0
      %v1194 = vadd.f32 %v1192, %v1193
      %v1195 = vsel %vm260, %v1148, 0.0
      %v1196 = vadd.f32 %v1194, %v1195
      %v1197 = vsel %vm260, %v1149, 0.0
      %v1198 = vadd.f32 %v1196, %v1197
      %v1199 = vsel %vm260, %v1150, 0.0
      %v1200 = vadd.f32 %v1198, %v1199
      %v1201 = vsel %vm260, %v1151, 0.0
      %v1202 = vadd.f32 %v1200, %v1201
      %v1203 = vsel %vm260, %v1152, 0.0
      %v1204 = vadd.f32 %v1202, %v1203
      %v1205 = vsel %vm260, %v1153, 0.0
      %v1206 = vadd.f32 %v1204, %v1205
      %v1207 = vsel %vm260, %v1154, 0.0
      %v1208 = vadd.f32 %v1206, %v1207
      %v1209 = vsel %vm260, %v1155, 0.0
      %v1210 = vadd.f32 %v1208, %v1209
      %v1211 = vsel %vm260, %v1156, 0.0
      %v1212 = vadd.f32 %v1210, %v1211
      %v1213 = vsel %vm260, %v1157, 0.0
      %v1214 = vadd.f32 %v1212, %v1213
      %v1215 = vsel %vm260, %v1158, 0.0
      %v1216 = vadd.f32 %v1214, %v1215
      %v1217 = vsel %vm260, %v1159, 0.0
      %v1218 = vadd.f32 %v1216, %v1217
      %v1219 = vsel %vm260, %v1160, 0.0
      %v1220 = vadd.f32 %v1218, %v1219
      %v1221 = vsel %vm260, %v1161, 0.0
      %v1222 = vadd.f32 %v1220, %v1221
      %v1223 = vsel %vm260, %v1162, 0.0
      %v1224 = vadd.f32 %v1222, %v1223
      %v1225 = vsel %vm260, %v1163, 0.0
      %v1226 = vadd.f32 %v1224, %v1225
      %v1227 = vmul.f32 %v1226, 0.03125
      %s1228 = scalar_lea.vmem %s163, 32
      %1229 = vst.msk [vmem:[%s1228] sm:$0xff] %vm260, %v1227
      %v1230 = vld [vmem:[%s158 + $0x1] sm:$0xff]
      %v1231 = vld [vmem:[%s158 + $0x11] sm:$0xff]
      %v1232 = vld [vmem:[%s158 + $0x21] sm:$0xff]
      %v1233 = vld [vmem:[%s158 + $0x31] sm:$0xff]
      %v1234 = vld [vmem:[%s158 + $0x41] sm:$0xff]
      %v1235 = vld [vmem:[%s158 + $0x51] sm:$0xff]
      %v1236 = vld [vmem:[%s158 + $0x61] sm:$0xff]
      %v1237 = vld [vmem:[%s158 + $0x71] sm:$0xff]
      %v1238 = vld [vmem:[%s158 + $0x81] sm:$0xff]
      %v1239 = vld [vmem:[%s158 + $0x91] sm:$0xff]
      %v1240 = vld [vmem:[%s158 + $0xa1] sm:$0xff]
      %v1241 = vld [vmem:[%s158 + $0xb1] sm:$0xff]
      %v1242 = vld [vmem:[%s158 + $0xc1] sm:$0xff]
      %v1243 = vld [vmem:[%s158 + $0xd1] sm:$0xff]
      %v1244 = vld [vmem:[%s158 + $0xe1] sm:$0xff]
      %v1245 = vld [vmem:[%s158 + $0xf1] sm:$0xff]
      %v1246 = vld [vmem:[%s158 + $0x101] sm:$0xff]
      %v1247 = vld [vmem:[%s158 + $0x111] sm:$0xff]
      %v1248 = vld [vmem:[%s158 + $0x121] sm:$0xff]
      %v1249 = vld [vmem:[%s158 + $0x131] sm:$0xff]
      %v1250 = vld [vmem:[%s158 + $0x141] sm:$0xff]
      %v1251 = vld [vmem:[%s158 + $0x151] sm:$0xff]
      %v1252 = vld [vmem:[%s158 + $0x161] sm:$0xff]
      %v1253 = vld [vmem:[%s158 + $0x171] sm:$0xff]
      %v1254 = vld [vmem:[%s158 + $0x181] sm:$0xff]
      %v1255 = vld [vmem:[%s158 + $0x191] sm:$0xff]
      %v1256 = vld [vmem:[%s158 + $0x1a1] sm:$0xff]
      %v1257 = vld [vmem:[%s158 + $0x1b1] sm:$0xff]
      %v1258 = vld [vmem:[%s158 + $0x1c1] sm:$0xff]
      %v1259 = vld [vmem:[%s158 + $0x1d1] sm:$0xff]
      %v1260 = vld [vmem:[%s158 + $0x1e1] sm:$0xff]
      %v1261 = vld [vmem:[%s158 + $0x1f1] sm:$0xff]
      %1294 = vrot.lane.b32.xlu0 %v1230, 126
      %v1295 = vpop.permute.xlu0 %1294
      %1296 = vrot.lane.b32.xlu0 %v1231, 126
      %v1297 = vpop.permute.xlu0 %1296
      %1298 = vrot.lane.b32.xlu0 %v1232, 126
      %v1299 = vpop.permute.xlu0 %1298
      %1300 = vrot.lane.b32.xlu0 %v1233, 126
      %v1301 = vpop.permute.xlu0 %1300
      %1302 = vrot.lane.b32.xlu0 %v1234, 126
      %v1303 = vpop.permute.xlu0 %1302
      %1304 = vrot.lane.b32.xlu0 %v1235, 126
      %v1305 = vpop.permute.xlu0 %1304
      %1306 = vrot.lane.b32.xlu0 %v1236, 126
      %v1307 = vpop.permute.xlu0 %1306
      %1308 = vrot.lane.b32.xlu0 %v1237, 126
      %v1309 = vpop.permute.xlu0 %1308
      %1310 = vrot.lane.b32.xlu0 %v1238, 126
      %v1311 = vpop.permute.xlu0 %1310
      %1312 = vrot.lane.b32.xlu0 %v1239, 126
      %v1313 = vpop.permute.xlu0 %1312
      %1314 = vrot.lane.b32.xlu0 %v1240, 126
      %v1315 = vpop.permute.xlu0 %1314
      %1316 = vrot.lane.b32.xlu0 %v1241, 126
      %v1317 = vpop.permute.xlu0 %1316
      %1318 = vrot.lane.b32.xlu0 %v1242, 126
      %v1319 = vpop.permute.xlu0 %1318
      %1320 = vrot.lane.b32.xlu0 %v1243, 126
      %v1321 = vpop.permute.xlu0 %1320
      %1322 = vrot.lane.b32.xlu0 %v1244, 126
      %v1323 = vpop.permute.xlu0 %1322
      %1324 = vrot.lane.b32.xlu0 %v1245, 126
      %v1325 = vpop.permute.xlu0 %1324
      %1326 = vrot.lane.b32.xlu0 %v1246, 126
      %v1327 = vpop.permute.xlu0 %1326
      %1328 = vrot.lane.b32.xlu0 %v1247, 126
      %v1329 = vpop.permute.xlu0 %1328
      %1330 = vrot.lane.b32.xlu0 %v1248, 126
      %v1331 = vpop.permute.xlu0 %1330
      %1332 = vrot.lane.b32.xlu0 %v1249, 126
      %v1333 = vpop.permute.xlu0 %1332
      %1334 = vrot.lane.b32.xlu0 %v1250, 126
      %v1335 = vpop.permute.xlu0 %1334
      %1336 = vrot.lane.b32.xlu0 %v1251, 126
      %v1337 = vpop.permute.xlu0 %1336
      %1338 = vrot.lane.b32.xlu0 %v1252, 126
      %v1339 = vpop.permute.xlu0 %1338
      %1340 = vrot.lane.b32.xlu0 %v1253, 126
      %v1341 = vpop.permute.xlu0 %1340
      %1342 = vrot.lane.b32.xlu0 %v1254, 126
      %v1343 = vpop.permute.xlu0 %1342
      %1344 = vrot.lane.b32.xlu0 %v1255, 126
      %v1345 = vpop.permute.xlu0 %1344
      %1346 = vrot.lane.b32.xlu0 %v1256, 126
      %v1347 = vpop.permute.xlu0 %1346
      %1348 = vrot.lane.b32.xlu0 %v1257, 126
      %v1349 = vpop.permute.xlu0 %1348
      %1350 = vrot.lane.b32.xlu0 %v1258, 126
      %v1351 = vpop.permute.xlu0 %1350
      %1352 = vrot.lane.b32.xlu0 %v1259, 126
      %v1353 = vpop.permute.xlu0 %1352
      %1354 = vrot.lane.b32.xlu0 %v1260, 126
      %v1355 = vpop.permute.xlu0 %1354
      %1356 = vrot.lane.b32.xlu0 %v1261, 126
      %v1357 = vpop.permute.xlu0 %1356
      %v1390 = vmul.f32 %v164, %v1295
      %v1391 = vmul.f32 %v165, %v1297
      %v1392 = vmul.f32 %v166, %v1299
      %v1393 = vmul.f32 %v167, %v1301
      %v1394 = vmul.f32 %v168, %v1303
      %v1395 = vmul.f32 %v169, %v1305
      %v1396 = vmul.f32 %v170, %v1307
      %v1397 = vmul.f32 %v171, %v1309
      %v1398 = vmul.f32 %v172, %v1311
      %v1399 = vmul.f32 %v173, %v1313
      %v1400 = vmul.f32 %v174, %v1315
      %v1401 = vmul.f32 %v175, %v1317
      %v1402 = vmul.f32 %v176, %v1319
      %v1403 = vmul.f32 %v177, %v1321
      %v1404 = vmul.f32 %v178, %v1323
      %v1405 = vmul.f32 %v179, %v1325
      %v1406 = vmul.f32 %v180, %v1327
      %v1407 = vmul.f32 %v181, %v1329
      %v1408 = vmul.f32 %v182, %v1331
      %v1409 = vmul.f32 %v183, %v1333
      %v1410 = vmul.f32 %v184, %v1335
      %v1411 = vmul.f32 %v185, %v1337
      %v1412 = vmul.f32 %v186, %v1339
      %v1413 = vmul.f32 %v187, %v1341
      %v1414 = vmul.f32 %v188, %v1343
      %v1415 = vmul.f32 %v189, %v1345
      %v1416 = vmul.f32 %v190, %v1347
      %v1417 = vmul.f32 %v191, %v1349
      %v1418 = vmul.f32 %v192, %v1351
      %v1419 = vmul.f32 %v193, %v1353
      %v1420 = vmul.f32 %v194, %v1355
      %v1421 = vmul.f32 %v195, %v1357
      %v1422 = vsel %vm260, %v1390, 0.0
      %v1423 = vsel %vm260, %v1391, 0.0
      %v1424 = vadd.f32 %v1422, %v1423
      %v1425 = vsel %vm260, %v1392, 0.0
      %v1426 = vadd.f32 %v1424, %v1425
      %v1427 = vsel %vm260, %v1393, 0.0
      %v1428 = vadd.f32 %v1426, %v1427
      %v1429 = vsel %vm260, %v1394, 0.0
      %v1430 = vadd.f32 %v1428, %v1429
      %v1431 = vsel %vm260, %v1395, 0.0
      %v1432 = vadd.f32 %v1430, %v1431
      %v1433 = vsel %vm260, %v1396, 0.0
      %v1434 = vadd.f32 %v1432, %v1433
      %v1435 = vsel %vm260, %v1397, 0.0
      %v1436 = vadd.f32 %v1434, %v1435
      %v1437 = vsel %vm260, %v1398, 0.0
      %v1438 = vadd.f32 %v1436, %v1437
      %v1439 = vsel %vm260, %v1399, 0.0
      %v1440 = vadd.f32 %v1438, %v1439
      %v1441 = vsel %vm260, %v1400, 0.0
      %v1442 = vadd.f32 %v1440, %v1441
      %v1443 = vsel %vm260, %v1401, 0.0
      %v1444 = vadd.f32 %v1442, %v1443
      %v1445 = vsel %vm260, %v1402, 0.0
      %v1446 = vadd.f32 %v1444, %v1445
      %v1447 = vsel %vm260, %v1403, 0.0
      %v1448 = vadd.f32 %v1446, %v1447
      %v1449 = vsel %vm260, %v1404, 0.0
      %v1450 = vadd.f32 %v1448, %v1449
      %v1451 = vsel %vm260, %v1405, 0.0
      %v1452 = vadd.f32 %v1450, %v1451
      %v1453 = vsel %vm260, %v1406, 0.0
      %v1454 = vadd.f32 %v1452, %v1453
      %v1455 = vsel %vm260, %v1407, 0.0
      %v1456 = vadd.f32 %v1454, %v1455
      %v1457 = vsel %vm260, %v1408, 0.0
      %v1458 = vadd.f32 %v1456, %v1457
      %v1459 = vsel %vm260, %v1409, 0.0
      %v1460 = vadd.f32 %v1458, %v1459
      %v1461 = vsel %vm260, %v1410, 0.0
      %v1462 = vadd.f32 %v1460, %v1461
      %v1463 = vsel %vm260, %v1411, 0.0
      %v1464 = vadd.f32 %v1462, %v1463
      %v1465 = vsel %vm260, %v1412, 0.0
      %v1466 = vadd.f32 %v1464, %v1465
      %v1467 = vsel %vm260, %v1413, 0.0
      %v1468 = vadd.f32 %v1466, %v1467
      %v1469 = vsel %vm260, %v1414, 0.0
      %v1470 = vadd.f32 %v1468, %v1469
      %v1471 = vsel %vm260, %v1415, 0.0
      %v1472 = vadd.f32 %v1470, %v1471
      %v1473 = vsel %vm260, %v1416, 0.0
      %v1474 = vadd.f32 %v1472, %v1473
      %v1475 = vsel %vm260, %v1417, 0.0
      %v1476 = vadd.f32 %v1474, %v1475
      %v1477 = vsel %vm260, %v1418, 0.0
      %v1478 = vadd.f32 %v1476, %v1477
      %v1479 = vsel %vm260, %v1419, 0.0
      %v1480 = vadd.f32 %v1478, %v1479
      %v1481 = vsel %vm260, %v1420, 0.0
      %v1482 = vadd.f32 %v1480, %v1481
      %v1483 = vsel %vm260, %v1421, 0.0
      %v1484 = vadd.f32 %v1482, %v1483
      %v1485 = vmul.f32 %v1484, 0.03125
      %s1486 = scalar_lea.vmem %s163, 40
      %1487 = vst.msk [vmem:[%s1486] sm:$0xff] %vm260, %v1485
      %v1488 = vld [vmem:[%s158 + $0x2] sm:$0xff]
      %v1489 = vld [vmem:[%s158 + $0x12] sm:$0xff]
      %v1490 = vld [vmem:[%s158 + $0x22] sm:$0xff]
      %v1491 = vld [vmem:[%s158 + $0x32] sm:$0xff]
      %v1492 = vld [vmem:[%s158 + $0x42] sm:$0xff]
      %v1493 = vld [vmem:[%s158 + $0x52] sm:$0xff]
      %v1494 = vld [vmem:[%s158 + $0x62] sm:$0xff]
      %v1495 = vld [vmem:[%s158 + $0x72] sm:$0xff]
      %v1496 = vld [vmem:[%s158 + $0x82] sm:$0xff]
      %v1497 = vld [vmem:[%s158 + $0x92] sm:$0xff]
      %v1498 = vld [vmem:[%s158 + $0xa2] sm:$0xff]
      %v1499 = vld [vmem:[%s158 + $0xb2] sm:$0xff]
      %v1500 = vld [vmem:[%s158 + $0xc2] sm:$0xff]
      %v1501 = vld [vmem:[%s158 + $0xd2] sm:$0xff]
      %v1502 = vld [vmem:[%s158 + $0xe2] sm:$0xff]
      %v1503 = vld [vmem:[%s158 + $0xf2] sm:$0xff]
      %v1504 = vld [vmem:[%s158 + $0x102] sm:$0xff]
      %v1505 = vld [vmem:[%s158 + $0x112] sm:$0xff]
      %v1506 = vld [vmem:[%s158 + $0x122] sm:$0xff]
      %v1507 = vld [vmem:[%s158 + $0x132] sm:$0xff]
      %v1508 = vld [vmem:[%s158 + $0x142] sm:$0xff]
      %v1509 = vld [vmem:[%s158 + $0x152] sm:$0xff]
      %v1510 = vld [vmem:[%s158 + $0x162] sm:$0xff]
      %v1511 = vld [vmem:[%s158 + $0x172] sm:$0xff]
      %v1512 = vld [vmem:[%s158 + $0x182] sm:$0xff]
      %v1513 = vld [vmem:[%s158 + $0x192] sm:$0xff]
      %v1514 = vld [vmem:[%s158 + $0x1a2] sm:$0xff]
      %v1515 = vld [vmem:[%s158 + $0x1b2] sm:$0xff]
      %v1516 = vld [vmem:[%s158 + $0x1c2] sm:$0xff]
      %v1517 = vld [vmem:[%s158 + $0x1d2] sm:$0xff]
      %v1518 = vld [vmem:[%s158 + $0x1e2] sm:$0xff]
      %v1519 = vld [vmem:[%s158 + $0x1f2] sm:$0xff]
      %v1520 = vmul.f32 %v164, %v1488
      %v1521 = vmul.f32 %v165, %v1489
      %v1522 = vmul.f32 %v166, %v1490
      %v1523 = vmul.f32 %v167, %v1491
      %v1524 = vmul.f32 %v168, %v1492
      %v1525 = vmul.f32 %v169, %v1493
      %v1526 = vmul.f32 %v170, %v1494
      %v1527 = vmul.f32 %v171, %v1495
      %v1528 = vmul.f32 %v172, %v1496
      %v1529 = vmul.f32 %v173, %v1497
      %v1530 = vmul.f32 %v174, %v1498
      %v1531 = vmul.f32 %v175, %v1499
      %v1532 = vmul.f32 %v176, %v1500
      %v1533 = vmul.f32 %v177, %v1501
      %v1534 = vmul.f32 %v178, %v1502
      %v1535 = vmul.f32 %v179, %v1503
      %v1536 = vmul.f32 %v180, %v1504
      %v1537 = vmul.f32 %v181, %v1505
      %v1538 = vmul.f32 %v182, %v1506
      %v1539 = vmul.f32 %v183, %v1507
      %v1540 = vmul.f32 %v184, %v1508
      %v1541 = vmul.f32 %v185, %v1509
      %v1542 = vmul.f32 %v186, %v1510
      %v1543 = vmul.f32 %v187, %v1511
      %v1544 = vmul.f32 %v188, %v1512
      %v1545 = vmul.f32 %v189, %v1513
      %v1546 = vmul.f32 %v190, %v1514
      %v1547 = vmul.f32 %v191, %v1515
      %v1548 = vmul.f32 %v192, %v1516
      %v1549 = vmul.f32 %v193, %v1517
      %v1550 = vmul.f32 %v194, %v1518
      %v1551 = vmul.f32 %v195, %v1519
      %v1552 = vsel %vm260, %v1520, 0.0
      %v1553 = vsel %vm260, %v1521, 0.0
      %v1554 = vadd.f32 %v1552, %v1553
      %v1555 = vsel %vm260, %v1522, 0.0
      %v1556 = vadd.f32 %v1554, %v1555
      %v1557 = vsel %vm260, %v1523, 0.0
      %v1558 = vadd.f32 %v1556, %v1557
      %v1559 = vsel %vm260, %v1524, 0.0
      %v1560 = vadd.f32 %v1558, %v1559
      %v1561 = vsel %vm260, %v1525, 0.0
      %v1562 = vadd.f32 %v1560, %v1561
      %v1563 = vsel %vm260, %v1526, 0.0
      %v1564 = vadd.f32 %v1562, %v1563
      %v1565 = vsel %vm260, %v1527, 0.0
      %v1566 = vadd.f32 %v1564, %v1565
      %v1567 = vsel %vm260, %v1528, 0.0
      %v1568 = vadd.f32 %v1566, %v1567
      %v1569 = vsel %vm260, %v1529, 0.0
      %v1570 = vadd.f32 %v1568, %v1569
      %v1571 = vsel %vm260, %v1530, 0.0
      %v1572 = vadd.f32 %v1570, %v1571
      %v1573 = vsel %vm260, %v1531, 0.0
      %v1574 = vadd.f32 %v1572, %v1573
      %v1575 = vsel %vm260, %v1532, 0.0
      %v1576 = vadd.f32 %v1574, %v1575
      %v1577 = vsel %vm260, %v1533, 0.0
      %v1578 = vadd.f32 %v1576, %v1577
      %v1579 = vsel %vm260, %v1534, 0.0
      %v1580 = vadd.f32 %v1578, %v1579
      %v1581 = vsel %vm260, %v1535, 0.0
      %v1582 = vadd.f32 %v1580, %v1581
      %v1583 = vsel %vm260, %v1536, 0.0
      %v1584 = vadd.f32 %v1582, %v1583
      %v1585 = vsel %vm260, %v1537, 0.0
      %v1586 = vadd.f32 %v1584, %v1585
      %v1587 = vsel %vm260, %v1538, 0.0
      %v1588 = vadd.f32 %v1586, %v1587
      %v1589 = vsel %vm260, %v1539, 0.0
      %v1590 = vadd.f32 %v1588, %v1589
      %v1591 = vsel %vm260, %v1540, 0.0
      %v1592 = vadd.f32 %v1590, %v1591
      %v1593 = vsel %vm260, %v1541, 0.0
      %v1594 = vadd.f32 %v1592, %v1593
      %v1595 = vsel %vm260, %v1542, 0.0
      %v1596 = vadd.f32 %v1594, %v1595
      %v1597 = vsel %vm260, %v1543, 0.0
      %v1598 = vadd.f32 %v1596, %v1597
      %v1599 = vsel %vm260, %v1544, 0.0
      %v1600 = vadd.f32 %v1598, %v1599
      %v1601 = vsel %vm260, %v1545, 0.0
      %v1602 = vadd.f32 %v1600, %v1601
      %v1603 = vsel %vm260, %v1546, 0.0
      %v1604 = vadd.f32 %v1602, %v1603
      %v1605 = vsel %vm260, %v1547, 0.0
      %v1606 = vadd.f32 %v1604, %v1605
      %v1607 = vsel %vm260, %v1548, 0.0
      %v1608 = vadd.f32 %v1606, %v1607
      %v1609 = vsel %vm260, %v1549, 0.0
      %v1610 = vadd.f32 %v1608, %v1609
      %v1611 = vsel %vm260, %v1550, 0.0
      %v1612 = vadd.f32 %v1610, %v1611
      %v1613 = vsel %vm260, %v1551, 0.0
      %v1614 = vadd.f32 %v1612, %v1613
      %v1615 = vmul.f32 %v1614, 0.03125
      %s1616 = scalar_lea.vmem %s163, 48
      %1617 = vst.msk [vmem:[%s1616] sm:$0xff] %vm260, %v1615
      %v1618 = vld [vmem:[%s158 + $0x2] sm:$0xff]
      %v1619 = vld [vmem:[%s158 + $0x12] sm:$0xff]
      %v1620 = vld [vmem:[%s158 + $0x22] sm:$0xff]
      %v1621 = vld [vmem:[%s158 + $0x32] sm:$0xff]
      %v1622 = vld [vmem:[%s158 + $0x42] sm:$0xff]
      %v1623 = vld [vmem:[%s158 + $0x52] sm:$0xff]
      %v1624 = vld [vmem:[%s158 + $0x62] sm:$0xff]
      %v1625 = vld [vmem:[%s158 + $0x72] sm:$0xff]
      %v1626 = vld [vmem:[%s158 + $0x82] sm:$0xff]
      %v1627 = vld [vmem:[%s158 + $0x92] sm:$0xff]
      %v1628 = vld [vmem:[%s158 + $0xa2] sm:$0xff]
      %v1629 = vld [vmem:[%s158 + $0xb2] sm:$0xff]
      %v1630 = vld [vmem:[%s158 + $0xc2] sm:$0xff]
      %v1631 = vld [vmem:[%s158 + $0xd2] sm:$0xff]
      %v1632 = vld [vmem:[%s158 + $0xe2] sm:$0xff]
      %v1633 = vld [vmem:[%s158 + $0xf2] sm:$0xff]
      %v1634 = vld [vmem:[%s158 + $0x102] sm:$0xff]
      %v1635 = vld [vmem:[%s158 + $0x112] sm:$0xff]
      %v1636 = vld [vmem:[%s158 + $0x122] sm:$0xff]
      %v1637 = vld [vmem:[%s158 + $0x132] sm:$0xff]
      %v1638 = vld [vmem:[%s158 + $0x142] sm:$0xff]
      %v1639 = vld [vmem:[%s158 + $0x152] sm:$0xff]
      %v1640 = vld [vmem:[%s158 + $0x162] sm:$0xff]
      %v1641 = vld [vmem:[%s158 + $0x172] sm:$0xff]
      %v1642 = vld [vmem:[%s158 + $0x182] sm:$0xff]
      %v1643 = vld [vmem:[%s158 + $0x192] sm:$0xff]
      %v1644 = vld [vmem:[%s158 + $0x1a2] sm:$0xff]
      %v1645 = vld [vmem:[%s158 + $0x1b2] sm:$0xff]
      %v1646 = vld [vmem:[%s158 + $0x1c2] sm:$0xff]
      %v1647 = vld [vmem:[%s158 + $0x1d2] sm:$0xff]
      %v1648 = vld [vmem:[%s158 + $0x1e2] sm:$0xff]
      %v1649 = vld [vmem:[%s158 + $0x1f2] sm:$0xff]
      %1682 = vrot.lane.b32.xlu0 %v1618, 127
      %v1683 = vpop.permute.xlu0 %1682
      %1684 = vrot.lane.b32.xlu0 %v1619, 127
      %v1685 = vpop.permute.xlu0 %1684
      %1686 = vrot.lane.b32.xlu0 %v1620, 127
      %v1687 = vpop.permute.xlu0 %1686
      %1688 = vrot.lane.b32.xlu0 %v1621, 127
      %v1689 = vpop.permute.xlu0 %1688
      %1690 = vrot.lane.b32.xlu0 %v1622, 127
      %v1691 = vpop.permute.xlu0 %1690
      %1692 = vrot.lane.b32.xlu0 %v1623, 127
      %v1693 = vpop.permute.xlu0 %1692
      %1694 = vrot.lane.b32.xlu0 %v1624, 127
      %v1695 = vpop.permute.xlu0 %1694
      %1696 = vrot.lane.b32.xlu0 %v1625, 127
      %v1697 = vpop.permute.xlu0 %1696
      %1698 = vrot.lane.b32.xlu0 %v1626, 127
      %v1699 = vpop.permute.xlu0 %1698
      %1700 = vrot.lane.b32.xlu0 %v1627, 127
      %v1701 = vpop.permute.xlu0 %1700
      %1702 = vrot.lane.b32.xlu0 %v1628, 127
      %v1703 = vpop.permute.xlu0 %1702
      %1704 = vrot.lane.b32.xlu0 %v1629, 127
      %v1705 = vpop.permute.xlu0 %1704
      %1706 = vrot.lane.b32.xlu0 %v1630, 127
      %v1707 = vpop.permute.xlu0 %1706
      %1708 = vrot.lane.b32.xlu0 %v1631, 127
      %v1709 = vpop.permute.xlu0 %1708
      %1710 = vrot.lane.b32.xlu0 %v1632, 127
      %v1711 = vpop.permute.xlu0 %1710
      %1712 = vrot.lane.b32.xlu0 %v1633, 127
      %v1713 = vpop.permute.xlu0 %1712
      %1714 = vrot.lane.b32.xlu0 %v1634, 127
      %v1715 = vpop.permute.xlu0 %1714
      %1716 = vrot.lane.b32.xlu0 %v1635, 127
      %v1717 = vpop.permute.xlu0 %1716
      %1718 = vrot.lane.b32.xlu0 %v1636, 127
      %v1719 = vpop.permute.xlu0 %1718
      %1720 = vrot.lane.b32.xlu0 %v1637, 127
      %v1721 = vpop.permute.xlu0 %1720
      %1722 = vrot.lane.b32.xlu0 %v1638, 127
      %v1723 = vpop.permute.xlu0 %1722
      %1724 = vrot.lane.b32.xlu0 %v1639, 127
      %v1725 = vpop.permute.xlu0 %1724
      %1726 = vrot.lane.b32.xlu0 %v1640, 127
      %v1727 = vpop.permute.xlu0 %1726
      %1728 = vrot.lane.b32.xlu0 %v1641, 127
      %v1729 = vpop.permute.xlu0 %1728
      %1730 = vrot.lane.b32.xlu0 %v1642, 127
      %v1731 = vpop.permute.xlu0 %1730
      %1732 = vrot.lane.b32.xlu0 %v1643, 127
      %v1733 = vpop.permute.xlu0 %1732
      %1734 = vrot.lane.b32.xlu0 %v1644, 127
      %v1735 = vpop.permute.xlu0 %1734
      %1736 = vrot.lane.b32.xlu0 %v1645, 127
      %v1737 = vpop.permute.xlu0 %1736
      %1738 = vrot.lane.b32.xlu0 %v1646, 127
      %v1739 = vpop.permute.xlu0 %1738
      %1740 = vrot.lane.b32.xlu0 %v1647, 127
      %v1741 = vpop.permute.xlu0 %1740
      %1742 = vrot.lane.b32.xlu0 %v1648, 127
      %v1743 = vpop.permute.xlu0 %1742
      %1744 = vrot.lane.b32.xlu0 %v1649, 127
      %v1745 = vpop.permute.xlu0 %1744
      %v1778 = vmul.f32 %v164, %v1683
      %v1779 = vmul.f32 %v165, %v1685
      %v1780 = vmul.f32 %v166, %v1687
      %v1781 = vmul.f32 %v167, %v1689
      %v1782 = vmul.f32 %v168, %v1691
      %v1783 = vmul.f32 %v169, %v1693
      %v1784 = vmul.f32 %v170, %v1695
      %v1785 = vmul.f32 %v171, %v1697
      %v1786 = vmul.f32 %v172, %v1699
      %v1787 = vmul.f32 %v173, %v1701
      %v1788 = vmul.f32 %v174, %v1703
      %v1789 = vmul.f32 %v175, %v1705
      %v1790 = vmul.f32 %v176, %v1707
      %v1791 = vmul.f32 %v177, %v1709
      %v1792 = vmul.f32 %v178, %v1711
      %v1793 = vmul.f32 %v179, %v1713
      %v1794 = vmul.f32 %v180, %v1715
      %v1795 = vmul.f32 %v181, %v1717
      %v1796 = vmul.f32 %v182, %v1719
      %v1797 = vmul.f32 %v183, %v1721
      %v1798 = vmul.f32 %v184, %v1723
      %v1799 = vmul.f32 %v185, %v1725
      %v1800 = vmul.f32 %v186, %v1727
      %v1801 = vmul.f32 %v187, %v1729
      %v1802 = vmul.f32 %v188, %v1731
      %v1803 = vmul.f32 %v189, %v1733
      %v1804 = vmul.f32 %v190, %v1735
      %v1805 = vmul.f32 %v191, %v1737
      %v1806 = vmul.f32 %v192, %v1739
      %v1807 = vmul.f32 %v193, %v1741
      %v1808 = vmul.f32 %v194, %v1743
      %v1809 = vmul.f32 %v195, %v1745
      %v1810 = vsel %vm260, %v1778, 0.0
      %v1811 = vsel %vm260, %v1779, 0.0
      %v1812 = vadd.f32 %v1810, %v1811
      %v1813 = vsel %vm260, %v1780, 0.0
      %v1814 = vadd.f32 %v1812, %v1813
      %v1815 = vsel %vm260, %v1781, 0.0
      %v1816 = vadd.f32 %v1814, %v1815
      %v1817 = vsel %vm260, %v1782, 0.0
      %v1818 = vadd.f32 %v1816, %v1817
      %v1819 = vsel %vm260, %v1783, 0.0
      %v1820 = vadd.f32 %v1818, %v1819
      %v1821 = vsel %vm260, %v1784, 0.0
      %v1822 = vadd.f32 %v1820, %v1821
      %v1823 = vsel %vm260, %v1785, 0.0
      %v1824 = vadd.f32 %v1822, %v1823
      %v1825 = vsel %vm260, %v1786, 0.0
      %v1826 = vadd.f32 %v1824, %v1825
      %v1827 = vsel %vm260, %v1787, 0.0
      %v1828 = vadd.f32 %v1826, %v1827
      %v1829 = vsel %vm260, %v1788, 0.0
      %v1830 = vadd.f32 %v1828, %v1829
      %v1831 = vsel %vm260, %v1789, 0.0
      %v1832 = vadd.f32 %v1830, %v1831
      %v1833 = vsel %vm260, %v1790, 0.0
      %v1834 = vadd.f32 %v1832, %v1833
      %v1835 = vsel %vm260, %v1791, 0.0
      %v1836 = vadd.f32 %v1834, %v1835
      %v1837 = vsel %vm260, %v1792, 0.0
      %v1838 = vadd.f32 %v1836, %v1837
      %v1839 = vsel %vm260, %v1793, 0.0
      %v1840 = vadd.f32 %v1838, %v1839
      %v1841 = vsel %vm260, %v1794, 0.0
      %v1842 = vadd.f32 %v1840, %v1841
      %v1843 = vsel %vm260, %v1795, 0.0
      %v1844 = vadd.f32 %v1842, %v1843
      %v1845 = vsel %vm260, %v1796, 0.0
      %v1846 = vadd.f32 %v1844, %v1845
      %v1847 = vsel %vm260, %v1797, 0.0
      %v1848 = vadd.f32 %v1846, %v1847
      %v1849 = vsel %vm260, %v1798, 0.0
      %v1850 = vadd.f32 %v1848, %v1849
      %v1851 = vsel %vm260, %v1799, 0.0
      %v1852 = vadd.f32 %v1850, %v1851
      %v1853 = vsel %vm260, %v1800, 0.0
      %v1854 = vadd.f32 %v1852, %v1853
      %v1855 = vsel %vm260, %v1801, 0.0
      %v1856 = vadd.f32 %v1854, %v1855
      %v1857 = vsel %vm260, %v1802, 0.0
      %v1858 = vadd.f32 %v1856, %v1857
      %v1859 = vsel %vm260, %v1803, 0.0
      %v1860 = vadd.f32 %v1858, %v1859
      %v1861 = vsel %vm260, %v1804, 0.0
      %v1862 = vadd.f32 %v1860, %v1861
      %v1863 = vsel %vm260, %v1805, 0.0
      %v1864 = vadd.f32 %v1862, %v1863
      %v1865 = vsel %vm260, %v1806, 0.0
      %v1866 = vadd.f32 %v1864, %v1865
      %v1867 = vsel %vm260, %v1807, 0.0
      %v1868 = vadd.f32 %v1866, %v1867
      %v1869 = vsel %vm260, %v1808, 0.0
      %v1870 = vadd.f32 %v1868, %v1869
      %v1871 = vsel %vm260, %v1809, 0.0
      %v1872 = vadd.f32 %v1870, %v1871
      %v1873 = vmul.f32 %v1872, 0.03125
      %s1874 = scalar_lea.vmem %s163, 56
      %1875 = vst.msk [vmem:[%s1874] sm:$0xff] %vm260, %v1873
      %v1876 = vld [vmem:[%s158 + $0x2] sm:$0xff]
      %v1877 = vld [vmem:[%s158 + $0x12] sm:$0xff]
      %v1878 = vld [vmem:[%s158 + $0x22] sm:$0xff]
      %v1879 = vld [vmem:[%s158 + $0x32] sm:$0xff]
      %v1880 = vld [vmem:[%s158 + $0x42] sm:$0xff]
      %v1881 = vld [vmem:[%s158 + $0x52] sm:$0xff]
      %v1882 = vld [vmem:[%s158 + $0x62] sm:$0xff]
      %v1883 = vld [vmem:[%s158 + $0x72] sm:$0xff]
      %v1884 = vld [vmem:[%s158 + $0x82] sm:$0xff]
      %v1885 = vld [vmem:[%s158 + $0x92] sm:$0xff]
      %v1886 = vld [vmem:[%s158 + $0xa2] sm:$0xff]
      %v1887 = vld [vmem:[%s158 + $0xb2] sm:$0xff]
      %v1888 = vld [vmem:[%s158 + $0xc2] sm:$0xff]
      %v1889 = vld [vmem:[%s158 + $0xd2] sm:$0xff]
      %v1890 = vld [vmem:[%s158 + $0xe2] sm:$0xff]
      %v1891 = vld [vmem:[%s158 + $0xf2] sm:$0xff]
      %v1892 = vld [vmem:[%s158 + $0x102] sm:$0xff]
      %v1893 = vld [vmem:[%s158 + $0x112] sm:$0xff]
      %v1894 = vld [vmem:[%s158 + $0x122] sm:$0xff]
      %v1895 = vld [vmem:[%s158 + $0x132] sm:$0xff]
      %v1896 = vld [vmem:[%s158 + $0x142] sm:$0xff]
      %v1897 = vld [vmem:[%s158 + $0x152] sm:$0xff]
      %v1898 = vld [vmem:[%s158 + $0x162] sm:$0xff]
      %v1899 = vld [vmem:[%s158 + $0x172] sm:$0xff]
      %v1900 = vld [vmem:[%s158 + $0x182] sm:$0xff]
      %v1901 = vld [vmem:[%s158 + $0x192] sm:$0xff]
      %v1902 = vld [vmem:[%s158 + $0x1a2] sm:$0xff]
      %v1903 = vld [vmem:[%s158 + $0x1b2] sm:$0xff]
      %v1904 = vld [vmem:[%s158 + $0x1c2] sm:$0xff]
      %v1905 = vld [vmem:[%s158 + $0x1d2] sm:$0xff]
      %v1906 = vld [vmem:[%s158 + $0x1e2] sm:$0xff]
      %v1907 = vld [vmem:[%s158 + $0x1f2] sm:$0xff]
      %1940 = vrot.lane.b32.xlu0 %v1876, 126
      %v1941 = vpop.permute.xlu0 %1940
      %1942 = vrot.lane.b32.xlu0 %v1877, 126
      %v1943 = vpop.permute.xlu0 %1942
      %1944 = vrot.lane.b32.xlu0 %v1878, 126
      %v1945 = vpop.permute.xlu0 %1944
      %1946 = vrot.lane.b32.xlu0 %v1879, 126
      %v1947 = vpop.permute.xlu0 %1946
      %1948 = vrot.lane.b32.xlu0 %v1880, 126
      %v1949 = vpop.permute.xlu0 %1948
      %1950 = vrot.lane.b32.xlu0 %v1881, 126
      %v1951 = vpop.permute.xlu0 %1950
      %1952 = vrot.lane.b32.xlu0 %v1882, 126
      %v1953 = vpop.permute.xlu0 %1952
      %1954 = vrot.lane.b32.xlu0 %v1883, 126
      %v1955 = vpop.permute.xlu0 %1954
      %1956 = vrot.lane.b32.xlu0 %v1884, 126
      %v1957 = vpop.permute.xlu0 %1956
      %1958 = vrot.lane.b32.xlu0 %v1885, 126
      %v1959 = vpop.permute.xlu0 %1958
      %1960 = vrot.lane.b32.xlu0 %v1886, 126
      %v1961 = vpop.permute.xlu0 %1960
      %1962 = vrot.lane.b32.xlu0 %v1887, 126
      %v1963 = vpop.permute.xlu0 %1962
      %1964 = vrot.lane.b32.xlu0 %v1888, 126
      %v1965 = vpop.permute.xlu0 %1964
      %1966 = vrot.lane.b32.xlu0 %v1889, 126
      %v1967 = vpop.permute.xlu0 %1966
      %1968 = vrot.lane.b32.xlu0 %v1890, 126
      %v1969 = vpop.permute.xlu0 %1968
      %1970 = vrot.lane.b32.xlu0 %v1891, 126
      %v1971 = vpop.permute.xlu0 %1970
      %1972 = vrot.lane.b32.xlu0 %v1892, 126
      %v1973 = vpop.permute.xlu0 %1972
      %1974 = vrot.lane.b32.xlu0 %v1893, 126
      %v1975 = vpop.permute.xlu0 %1974
      %1976 = vrot.lane.b32.xlu0 %v1894, 126
      %v1977 = vpop.permute.xlu0 %1976
      %1978 = vrot.lane.b32.xlu0 %v1895, 126
      %v1979 = vpop.permute.xlu0 %1978
      %1980 = vrot.lane.b32.xlu0 %v1896, 126
      %v1981 = vpop.permute.xlu0 %1980
      %1982 = vrot.lane.b32.xlu0 %v1897, 126
      %v1983 = vpop.permute.xlu0 %1982
      %1984 = vrot.lane.b32.xlu0 %v1898, 126
      %v1985 = vpop.permute.xlu0 %1984
      %1986 = vrot.lane.b32.xlu0 %v1899, 126
      %v1987 = vpop.permute.xlu0 %1986
      %1988 = vrot.lane.b32.xlu0 %v1900, 126
      %v1989 = vpop.permute.xlu0 %1988
      %1990 = vrot.lane.b32.xlu0 %v1901, 126
      %v1991 = vpop.permute.xlu0 %1990
      %1992 = vrot.lane.b32.xlu0 %v1902, 126
      %v1993 = vpop.permute.xlu0 %1992
      %1994 = vrot.lane.b32.xlu0 %v1903, 126
      %v1995 = vpop.permute.xlu0 %1994
      %1996 = vrot.lane.b32.xlu0 %v1904, 126
      %v1997 = vpop.permute.xlu0 %1996
      %1998 = vrot.lane.b32.xlu0 %v1905, 126
      %v1999 = vpop.permute.xlu0 %1998
      %2000 = vrot.lane.b32.xlu0 %v1906, 126
      %v2001 = vpop.permute.xlu0 %2000
      %2002 = vrot.lane.b32.xlu0 %v1907, 126
      %v2003 = vpop.permute.xlu0 %2002
      %v2036 = vmul.f32 %v164, %v1941
      %v2037 = vmul.f32 %v165, %v1943
      %v2038 = vmul.f32 %v166, %v1945
      %v2039 = vmul.f32 %v167, %v1947
      %v2040 = vmul.f32 %v168, %v1949
      %v2041 = vmul.f32 %v169, %v1951
      %v2042 = vmul.f32 %v170, %v1953
      %v2043 = vmul.f32 %v171, %v1955
      %v2044 = vmul.f32 %v172, %v1957
      %v2045 = vmul.f32 %v173, %v1959
      %v2046 = vmul.f32 %v174, %v1961
      %v2047 = vmul.f32 %v175, %v1963
      %v2048 = vmul.f32 %v176, %v1965
      %v2049 = vmul.f32 %v177, %v1967
      %v2050 = vmul.f32 %v178, %v1969
      %v2051 = vmul.f32 %v179, %v1971
      %v2052 = vmul.f32 %v180, %v1973
      %v2053 = vmul.f32 %v181, %v1975
      %v2054 = vmul.f32 %v182, %v1977
      %v2055 = vmul.f32 %v183, %v1979
      %v2056 = vmul.f32 %v184, %v1981
      %v2057 = vmul.f32 %v185, %v1983
      %v2058 = vmul.f32 %v186, %v1985
      %v2059 = vmul.f32 %v187, %v1987
      %v2060 = vmul.f32 %v188, %v1989
      %v2061 = vmul.f32 %v189, %v1991
      %v2062 = vmul.f32 %v190, %v1993
      %v2063 = vmul.f32 %v191, %v1995
      %v2064 = vmul.f32 %v192, %v1997
      %v2065 = vmul.f32 %v193, %v1999
      %v2066 = vmul.f32 %v194, %v2001
      %v2067 = vmul.f32 %v195, %v2003
      %v2068 = vsel %vm260, %v2036, 0.0
      %v2069 = vsel %vm260, %v2037, 0.0
      %v2070 = vadd.f32 %v2068, %v2069
      %v2071 = vsel %vm260, %v2038, 0.0
      %v2072 = vadd.f32 %v2070, %v2071
      %v2073 = vsel %vm260, %v2039, 0.0
      %v2074 = vadd.f32 %v2072, %v2073
      %v2075 = vsel %vm260, %v2040, 0.0
      %v2076 = vadd.f32 %v2074, %v2075
      %v2077 = vsel %vm260, %v2041, 0.0
      %v2078 = vadd.f32 %v2076, %v2077
      %v2079 = vsel %vm260, %v2042, 0.0
      %v2080 = vadd.f32 %v2078, %v2079
      %v2081 = vsel %vm260, %v2043, 0.0
      %v2082 = vadd.f32 %v2080, %v2081
      %v2083 = vsel %vm260, %v2044, 0.0
      %v2084 = vadd.f32 %v2082, %v2083
      %v2085 = vsel %vm260, %v2045, 0.0
      %v2086 = vadd.f32 %v2084, %v2085
      %v2087 = vsel %vm260, %v2046, 0.0
      %v2088 = vadd.f32 %v2086, %v2087
      %v2089 = vsel %vm260, %v2047, 0.0
      %v2090 = vadd.f32 %v2088, %v2089
      %v2091 = vsel %vm260, %v2048, 0.0
      %v2092 = vadd.f32 %v2090, %v2091
      %v2093 = vsel %vm260, %v2049, 0.0
      %v2094 = vadd.f32 %v2092, %v2093
      %v2095 = vsel %vm260, %v2050, 0.0
      %v2096 = vadd.f32 %v2094, %v2095
      %v2097 = vsel %vm260, %v2051, 0.0
      %v2098 = vadd.f32 %v2096, %v2097
      %v2099 = vsel %vm260, %v2052, 0.0
      %v2100 = vadd.f32 %v2098, %v2099
      %v2101 = vsel %vm260, %v2053, 0.0
      %v2102 = vadd.f32 %v2100, %v2101
      %v2103 = vsel %vm260, %v2054, 0.0
      %v2104 = vadd.f32 %v2102, %v2103
      %v2105 = vsel %vm260, %v2055, 0.0
      %v2106 = vadd.f32 %v2104, %v2105
      %v2107 = vsel %vm260, %v2056, 0.0
      %v2108 = vadd.f32 %v2106, %v2107
      %v2109 = vsel %vm260, %v2057, 0.0
      %v2110 = vadd.f32 %v2108, %v2109
      %v2111 = vsel %vm260, %v2058, 0.0
      %v2112 = vadd.f32 %v2110, %v2111
      %v2113 = vsel %vm260, %v2059, 0.0
      %v2114 = vadd.f32 %v2112, %v2113
      %v2115 = vsel %vm260, %v2060, 0.0
      %v2116 = vadd.f32 %v2114, %v2115
      %v2117 = vsel %vm260, %v2061, 0.0
      %v2118 = vadd.f32 %v2116, %v2117
      %v2119 = vsel %vm260, %v2062, 0.0
      %v2120 = vadd.f32 %v2118, %v2119
      %v2121 = vsel %vm260, %v2063, 0.0
      %v2122 = vadd.f32 %v2120, %v2121
      %v2123 = vsel %vm260, %v2064, 0.0
      %v2124 = vadd.f32 %v2122, %v2123
      %v2125 = vsel %vm260, %v2065, 0.0
      %v2126 = vadd.f32 %v2124, %v2125
      %v2127 = vsel %vm260, %v2066, 0.0
      %v2128 = vadd.f32 %v2126, %v2127
      %v2129 = vsel %vm260, %v2067, 0.0
      %v2130 = vadd.f32 %v2128, %v2129
      %v2131 = vmul.f32 %v2130, 0.03125
      %s2132 = scalar_lea.vmem %s163, 64
      %2133 = vst.msk [vmem:[%s2132] sm:$0xff] %vm260, %v2131
      %p2134 = scmp.lt.s32.totalorder %s13, 1
      %s2135 = scalar_select %p2134, %s13, 1
      %s2136 = smul.addr %s2135, 9
      %s2137 = smul.addr %s2136, 8
      %s2138 = scalar_lea.vmem %s2, %s2137
      // Predicated region
      $region29: #{tpu_custom_call.1} parent=27 // pred_check
        %p2139 = pneg %p83
      $region30: #{tpu_custom_call.1} parent=27 // pred_check_branch
        %2141 = sbr.rel (%p2139) target = $region32
      $region31: #{tpu_custom_call.1} parent=27 // pred_region
        _
      $region32: #{tpu_custom_call.1} parent=27 // pred_fallthru
        _
    $region28: #{tpu_custom_call.1} parent=5 // pred_fallthru
      _
    %p2142 = scmp.le.s32.totalorder 2, %s8
    // Predicated region
    $region33: #{tpu_custom_call.1} parent=5 // pred_check
      %p2143 = pneg %p2142
    $region34: #{tpu_custom_call.1} parent=5 // pred_check_branch
      %2145 = sbr.rel (%p2143) target = $region36
    $region35: #{tpu_custom_call.1} parent=5 // pred_region
      %s2146 = ssub.s32 %s8, 2
      // Predicated region
      $region37: #{tpu_custom_call.1} parent=35 // pred_check
        %p2147 = pneg %p89
      $region38: #{tpu_custom_call.1} parent=35 // pred_check_branch
        %2149 = sbr.rel (%p2147) target = $region40
      $region39: #{tpu_custom_call.1} parent=35 // pred_region
        %p2150 = scmp.lt.s32.totalorder %s14, 1
        %s2151 = scalar_select %p2150, %s14, 1
        %s2152 = smul.addr %s2151, 9
        %s2153 = smul.addr %s2152, 8
        %s2154 = scalar_lea.vmem %s2, %s2153
      $region40: #{tpu_custom_call.1} parent=35 // pred_fallthru
        _
    $region36: #{tpu_custom_call.1} parent=5 // pred_fallthru
      _
  $region6: #{tpu_custom_call.1} parent=0 // loop_footer
    %s12 = sadd.s32 1, %s8
  $region7: #{tpu_custom_call.1} parent=0 // loop_footer_branch
    %7 = sbr.rel target = $region3
  $region8: #{tpu_custom_call.1} parent=0 // loop_exit
    _

</llo_original>
